<compile_context>
chip_gen: v6e
topology: v6e:2x2x1
jax: 0.10.0
libtpu: 0.0.40
codegen_flags: <defaults>
</compile_context>

<pallas_src>
import jax
import jax.numpy as jnp
from jax.experimental import pallas as pl
from jax.experimental.pallas import tpu as pltpu


def _se_gate_mul_kernel(gate_ref, x_ref, o_ref):
    # gate_ref: (tile_nc, 1)   x_ref: (tile_nc, HW)   o_ref: (tile_nc, HW)
    g = jax.nn.sigmoid(gate_ref[...].astype(jnp.float32))   # EUP exp, f32
    x = x_ref[...]
    # Multiply in the native activation dtype (bf16 stays bf16 on v6e/v7x).
    o_ref[...] = (x * g.astype(x.dtype)).astype(o_ref.dtype)


def _round_up(x, m):
    return ((x + m - 1) // m) * m


def _vmem_budget():
    """(tile budget bytes, scoped vmem_limit_bytes), keyed off physical VMEM."""
    try:
        cap = pltpu.get_tpu_info().vmem_capacity_bytes
    except Exception:  # unknown generation / API mismatch -> conservative
        cap = None
    if cap is not None and cap >= 96 * 1024 * 1024:
        # v5e / v6e: 128 MiB physical VMEM -> afford larger tiles.
        return 48 * 1024 * 1024, 64 * 1024 * 1024
    # v7x (64 MiB physical, 32 MiB scoped default) or unknown: stay safe.
    return 20 * 1024 * 1024, 32 * 1024 * 1024


def _pick_tile_nc(nc, hw, x_itemsize, gate_itemsize, budget_bytes):
    """Largest NC tile whose lane-padded VMEM footprint fits the budget,
    with an even, balanced step count when the grid has >1 step."""
    hw_pad = _round_up(hw, 128)           # lane padding of x/out VMEM tiles
    per_row = (
        2 * 2 * hw_pad * x_itemsize       # x + out, double-buffered, lane-padded
        + 2 * 128 * gate_itemsize         # gate column pads to 128 lanes (margin: 2 bufs)
    )
    max_rows = max(8, budget_bytes // per_row)
    if nc <= max_rows:
        return nc                         # full extent: (8,128) rule trivially satisfied
    # Even number of (near-)equal steps so v7x's two TensorCores get equal work
    # under dimension_semantics=("parallel",); harmless on v5e/v6e (1 TC).
    steps = 2 * pl.cdiv(nc, 2 * max_rows)
    return max(8, _round_up(pl.cdiv(nc, steps), 8))


def se_gate_mul(gate_nchw, x_nchw, *, in_place=False, budget_bytes=None):
    """Computes sigmoid(gate) * x with NumPy/PyTorch broadcasting.

    gate_nchw: (N, C, 1, 1)
    x_nchw:    (N, C, H, W)
    in_place:  alias x -> out (only when the x buffer is donatable).
    returns:   (N, C, H, W)
    """
    n, c, h, w = x_nchw.shape
    assert gate_nchw.shape == (n, c, 1, 1)

    nc, hw = n * c, h * w
    gate2d = gate_nchw.reshape(nc, 1)
    x2d = x_nchw.reshape(nc, hw)

    default_budget, vmem_limit = _vmem_budget()
    if budget_bytes is None:
        budget_bytes = default_budget
    tile_nc = _pick_tile_nc(
        nc, hw, x2d.dtype.itemsize, gate2d.dtype.itemsize, budget_bytes
    )
    grid = (pl.cdiv(nc, tile_nc),)

    def build(single_buffer_gate):
        gate_kwargs = (
            {"pipeline_mode": pl.Buffered(1)} if single_buffer_gate else {}
        )
        return pl.pallas_call(
            _se_gate_mul_kernel,
            out_shape=jax.ShapeDtypeStruct((nc, hw), x_nchw.dtype),
            grid=grid,
            in_specs=[
                pl.BlockSpec((tile_nc, 1), lambda i: (i, 0), **gate_kwargs),
                pl.BlockSpec((tile_nc, hw), lambda i: (i, 0)),
            ],
            out_specs=pl.BlockSpec((tile_nc, hw), lambda i: (i, 0)),
            compiler_params=pltpu.CompilerParams(
                dimension_semantics=("parallel",),
                vmem_limit_bytes=vmem_limit,
            ),
            # In-place multiply (x2d -> out2d) when the caller donates x.
            input_output_aliases=({1: 0} if in_place else {}),
        )

    try:
        out2d = build(True)(gate2d, x2d)
    except Exception:
        # Fallback for jax versions without BlockSpec(pipeline_mode=...).
        out2d = build(False)(gate2d, x2d)

    return out2d.reshape(n, c, h, w)


if __name__ == "__main__":
    key = jax.random.PRNGKey(0)
    k1, k2, k3, k4 = jax.random.split(key, 4)

    # Shapes from the PyTorch module: x238 = (1, 432, 1, 1), x234 = (1, 432, 14, 14)
    x238 = jax.random.normal(k1, (1, 432, 1, 1), dtype=jnp.float32)    # SE gate
    x234 = jax.random.normal(k2, (1, 432, 14, 14), dtype=jnp.float32)  # feature map

    out = se_gate_mul(x238, x234)
    jax.block_until_ready(out)
    ref = jax.nn.sigmoid(x238) * x234
    assert out.shape == (1, 432, 14, 14)
    assert jnp.allclose(out, ref, atol=1e-5, rtol=1e-5)

    # Larger case with a deliberately small VMEM budget to exercise the
    # balanced multi-step NC grid (nc = 3456 -> 4 equal tiles of 864 rows).
    g_big = jax.random.normal(k3, (8, 432, 1, 1), dtype=jnp.float32)
    x_big = jax.random.normal(k4, (8, 432, 14, 14), dtype=jnp.float32)
    out_big = se_gate_mul(g_big, x_big, budget_bytes=4 * 1024 * 1024)
    jax.block_until_ready(out_big)
    ref_big = jax.nn.sigmoid(g_big) * x_big
    assert out_big.shape == (8, 432, 14, 14)
    assert jnp.allclose(out_big, ref_big, atol=1e-5, rtol=1e-5)

    print("KERNEL_OK")
</pallas_src>

<mosaic_0001>
module attributes {stable_mosaic.version = 11 : i64} {
  func.func @_se_gate_mul_kernel(%arg0: i32, %arg1: memref<432x1xf32, #tpu.memory_space<vmem>>, %arg2: memref<432x196xf32, #tpu.memory_space<vmem>>, %arg3: memref<432x196xf32, #tpu.memory_space<vmem>>) attributes {dimension_semantics = [#tpu.dimension_semantics<parallel>], iteration_bounds = array<i64: 1>, scalar_prefetch = 0 : i64, scratch_operands = 0 : i64, tpu.core_type = #tpu.core_type<tc>, window_params = [{pipeline_mode = #tpu.pipeline_mode<synchronous>, transform_indices = @transform_0, window_bounds = array<i64: 432, 1>}, {transform_indices = @transform_1, window_bounds = array<i64: 432, 196>}, {transform_indices = @transform_2, window_bounds = array<i64: 432, 196>}]} {
    %c0 = arith.constant 0 : index
    %c0_0 = arith.constant 0 : index
    %0 = vector.load %arg1[%c0, %c0_0] : memref<432x1xf32, #tpu.memory_space<vmem>>, vector<432x1xf32>
    %1 = arith.negf %0 : vector<432x1xf32>
    %2 = math.exp %1 : vector<432x1xf32>
    %cst = arith.constant 1.000000e+00 : f32
    %3 = vector.broadcast %cst : f32 to vector<432x1xf32>
    %4 = arith.addf %3, %2 : vector<432x1xf32>
    %5 = arith.divf %3, %4 : vector<432x1xf32>
    %c0_1 = arith.constant 0 : index
    %c0_2 = arith.constant 0 : index
    %6 = vector.load %arg2[%c0_1, %c0_2] : memref<432x196xf32, #tpu.memory_space<vmem>>, vector<432x196xf32>
    %7 = vector.broadcast %5 : vector<432x1xf32> to vector<432x196xf32>
    %8 = arith.mulf %6, %7 : vector<432x196xf32>
    %c0_3 = arith.constant 0 : index
    %c0_4 = arith.constant 0 : index
    %9 = vector.load %arg3[%c0_3, %c0_4] : memref<432x196xf32, #tpu.memory_space<vmem>>, vector<432x196xf32>
    tpu.vector_store %arg3[%c0_3, %c0_4], %8 {strides = array<i32>} : memref<432x196xf32, #tpu.memory_space<vmem>>, vector<432x196xf32>,
    return
  }
  func.func @transform_0(%arg0: i32) -> (i32, i32) {
    %c0_i32 = arith.constant 0 : i32
    %c0_i32_0 = arith.constant 0 : i32
    return %arg0, %c0_i32 : i32, i32
  }
  func.func @transform_1(%arg0: i32) -> (i32, i32) {
    %c0_i32 = arith.constant 0 : i32
    %c0_i32_0 = arith.constant 0 : i32
    return %arg0, %c0_i32 : i32, i32
  }
  func.func @transform_2(%arg0: i32) -> (i32, i32) {
    %c0_i32 = arith.constant 0 : i32
    %c0_i32_0 = arith.constant 0 : i32
    return %arg0, %c0_i32 : i32, i32
  }
}

module attributes {stable_mosaic.version = 11 : i64} {
  func.func @_se_gate_mul_kernel(%arg0: i32, %arg1: memref<432x1xf32, #tpu.memory_space<vmem>>, %arg2: memref<432x196xf32, #tpu.memory_space<vmem>>, %arg3: memref<432x196xf32, #tpu.memory_space<vmem>>) attributes {dimension_semantics = [#tpu.dimension_semantics<parallel>], iteration_bounds = array<i64: 1>, scalar_prefetch = 0 : i64, scratch_operands = 0 : i64, tpu.core_type = #tpu.core_type<tc>, window_params = [{transform_indices = @transform_0, window_bounds = array<i64: 432, 1>}, {transform_indices = @transform_1, window_bounds = array<i64: 432, 196>}, {transform_indices = @transform_2, window_bounds = array<i64: 432, 196>}]} {
    %c0 = arith.constant 0 : index
    %c0_0 = arith.constant 0 : index
    %0 = vector.load %arg1[%c0, %c0_0] : memref<432x1xf32, #tpu.memory_space<vmem>>, vector<432x1xf32>
    %1 = arith.negf %0 : vector<432x1xf32>
    %2 = math.exp %1 : vector<432x1xf32>
    %cst = arith.constant 1.000000e+00 : f32
    %3 = vector.broadcast %cst : f32 to vector<432x1xf32>
    %4 = arith.addf %3, %2 : vector<432x1xf32>
    %5 = arith.divf %3, %4 : vector<432x1xf32>
    %c0_1 = arith.constant 0 : index
    %c0_2 = arith.constant 0 : index
    %6 = vector.load %arg2[%c0_1, %c0_2] : memref<432x196xf32, #tpu.memory_space<vmem>>, vector<432x196xf32>
    %7 = vector.broadcast %5 : vector<432x1xf32> to vector<432x196xf32>
    %8 = arith.mulf %6, %7 : vector<432x196xf32>
    %c0_3 = arith.constant 0 : index
    %c0_4 = arith.constant 0 : index
    %9 = vector.load %arg3[%c0_3, %c0_4] : memref<432x196xf32, #tpu.memory_space<vmem>>, vector<432x196xf32>
    tpu.vector_store %arg3[%c0_3, %c0_4], %8 {strides = array<i32>} : memref<432x196xf32, #tpu.memory_space<vmem>>, vector<432x196xf32>,
    return
  }
  func.func @transform_0(%arg0: i32) -> (i32, i32) {
    %c0_i32 = arith.constant 0 : i32
    %c0_i32_0 = arith.constant 0 : i32
    return %arg0, %c0_i32 : i32, i32
  }
  func.func @transform_1(%arg0: i32) -> (i32, i32) {
    %c0_i32 = arith.constant 0 : i32
    %c0_i32_0 = arith.constant 0 : i32
    return %arg0, %c0_i32 : i32, i32
  }
  func.func @transform_2(%arg0: i32) -> (i32, i32) {
    %c0_i32 = arith.constant 0 : i32
    %c0_i32_0 = arith.constant 0 : i32
    return %arg0, %c0_i32 : i32, i32
  }
}

</mosaic_0001>

<llo_original>
// kernel: tpu_custom_call.1
$region0: #{tpu_custom_call.1}
  #allocation0 [shape = 'u32[]', space=smem, size = 0x4, offset = 0x4, fixed_abs, tag = 'smem constant byte address 0x4 - core index']
  #allocation1 [shape = 'u32[144,128]{1,0:T(1,128)}', space=vmem, size = 0x12000, scoped, tag = 'internal scratch']
  %s0 = inlined_call_operand.vmem [shape: f32[432,1], index: 0, kind: input, shape index: {}]
  %s1 = inlined_call_operand.vmem [shape: f32[432,196], index: 1, kind: input, shape index: {}]
  %s2 = inlined_call_operand.vmem [shape: f32[432,196], index: 2, kind: output, shape index: {}]
  %s3 = sld [smem:[#allocation0]]
  $region18: #{tpu_custom_call.1} parent=0
    _
  %s5 = ssub.s32 1, %s3
  %s6 = scalar_select 0, %s5, %s3
  // Predicated region
  $region2: #{tpu_custom_call.1} parent=0 // pred_check
    _
  $region3: #{tpu_custom_call.1} parent=0 // pred_check_branch
    %8 = sbr.rel (0) target = $region5
  $region4: #{tpu_custom_call.1} parent=0 // pred_region
    _
  $region5: #{tpu_custom_call.1} parent=0 // pred_fallthru
    _
  // Predicated region
  $region6: #{tpu_custom_call.1} parent=0 // pred_check
    _
  $region7: #{tpu_custom_call.1} parent=0 // pred_check_branch
    %10 = sbr.rel (0) target = $region9
  $region8: #{tpu_custom_call.1} parent=0 // pred_region
    _
  $region9: #{tpu_custom_call.1} parent=0 // pred_fallthru
    _
  %v11 = vld [vmem:[%s0] sm:$0xff]
  %v12 = vld [vmem:[%s0 + $0x8] sm:$0xff]
  %v13 = vld [vmem:[%s0 + $0x10] sm:$0xff]
  %v14 = vld [vmem:[%s0 + $0x18] sm:$0xff]
  %v15 = vld [vmem:[%s0 + $0x20] sm:$0xff]
  %v16 = vld [vmem:[%s0 + $0x28] sm:$0xff]
  %v17 = vld [vmem:[%s0 + $0x30] sm:$0xff]
  %v18 = vld [vmem:[%s0 + $0x38] sm:$0xff]
  %v19 = vld [vmem:[%s0 + $0x40] sm:$0xff]
  %v20 = vld [vmem:[%s0 + $0x48] sm:$0xff]
  %v21 = vld [vmem:[%s0 + $0x50] sm:$0xff]
  %v22 = vld [vmem:[%s0 + $0x58] sm:$0xff]
  %v23 = vld [vmem:[%s0 + $0x60] sm:$0xff]
  %v24 = vld [vmem:[%s0 + $0x68] sm:$0xff]
  %v25 = vld [vmem:[%s0 + $0x70] sm:$0xff]
  %v26 = vld [vmem:[%s0 + $0x78] sm:$0xff]
  %v27 = vld [vmem:[%s0 + $0x80] sm:$0xff]
  %v28 = vld [vmem:[%s0 + $0x88] sm:$0xff]
  %v29 = vld [vmem:[%s0 + $0x90] sm:$0xff]
  %v30 = vld [vmem:[%s0 + $0x98] sm:$0xff]
  %v31 = vld [vmem:[%s0 + $0xa0] sm:$0xff]
  %v32 = vld [vmem:[%s0 + $0xa8] sm:$0xff]
  %v33 = vld [vmem:[%s0 + $0xb0] sm:$0xff]
  %v34 = vld [vmem:[%s0 + $0xb8] sm:$0xff]
  %v35 = vld [vmem:[%s0 + $0xc0] sm:$0xff]
  %v36 = vld [vmem:[%s0 + $0xc8] sm:$0xff]
  %v37 = vld [vmem:[%s0 + $0xd0] sm:$0xff]
  %v38 = vld [vmem:[%s0 + $0xd8] sm:$0xff]
  %v39 = vld [vmem:[%s0 + $0xe0] sm:$0xff]
  %v40 = vld [vmem:[%s0 + $0xe8] sm:$0xff]
  %v41 = vld [vmem:[%s0 + $0xf0] sm:$0xff]
  %v42 = vld [vmem:[%s0 + $0xf8] sm:$0xff]
  %v43 = vld [vmem:[%s0 + $0x100] sm:$0xff]
  %v44 = vld [vmem:[%s0 + $0x108] sm:$0xff]
  %v45 = vld [vmem:[%s0 + $0x110] sm:$0xff]
  %v46 = vld [vmem:[%s0 + $0x118] sm:$0xff]
  %v47 = vld [vmem:[%s0 + $0x120] sm:$0xff]
  %v48 = vld [vmem:[%s0 + $0x128] sm:$0xff]
  %v49 = vld [vmem:[%s0 + $0x130] sm:$0xff]
  %v50 = vld [vmem:[%s0 + $0x138] sm:$0xff]
  %v51 = vld [vmem:[%s0 + $0x140] sm:$0xff]
  %v52 = vld [vmem:[%s0 + $0x148] sm:$0xff]
  %v53 = vld [vmem:[%s0 + $0x150] sm:$0xff]
  %v54 = vld [vmem:[%s0 + $0x158] sm:$0xff]
  %v55 = vld [vmem:[%s0 + $0x160] sm:$0xff]
  %v56 = vld [vmem:[%s0 + $0x168] sm:$0xff]
  %v57 = vld [vmem:[%s0 + $0x170] sm:$0xff]
  %v58 = vld [vmem:[%s0 + $0x178] sm:$0xff]
  %v59 = vld [vmem:[%s0 + $0x180] sm:$0xff]
  %v60 = vld [vmem:[%s0 + $0x188] sm:$0xff]
  %v61 = vld [vmem:[%s0 + $0x190] sm:$0xff]
  %v62 = vld [vmem:[%s0 + $0x198] sm:$0xff]
  %v63 = vld [vmem:[%s0 + $0x1a0] sm:$0xff]
  %v64 = vld [vmem:[%s0 + $0x1a8] sm:$0xff]
  %v65 = vxor.u32 %v11, 2147483648
  %v66 = vxor.u32 %v12, 2147483648
  %v67 = vxor.u32 %v13, 2147483648
  %v68 = vxor.u32 %v14, 2147483648
  %v69 = vxor.u32 %v15, 2147483648
  %v70 = vxor.u32 %v16, 2147483648
  %v71 = vxor.u32 %v17, 2147483648
  %v72 = vxor.u32 %v18, 2147483648
  %v73 = vxor.u32 %v19, 2147483648
  %v74 = vxor.u32 %v20, 2147483648
  %v75 = vxor.u32 %v21, 2147483648
  %v76 = vxor.u32 %v22, 2147483648
  %v77 = vxor.u32 %v23, 2147483648
  %v78 = vxor.u32 %v24, 2147483648
  %v79 = vxor.u32 %v25, 2147483648
  %v80 = vxor.u32 %v26, 2147483648
  %v81 = vxor.u32 %v27, 2147483648
  %v82 = vxor.u32 %v28, 2147483648
  %v83 = vxor.u32 %v29, 2147483648
  %v84 = vxor.u32 %v30, 2147483648
  %v85 = vxor.u32 %v31, 2147483648
  %v86 = vxor.u32 %v32, 2147483648
  %v87 = vxor.u32 %v33, 2147483648
  %v88 = vxor.u32 %v34, 2147483648
  %v89 = vxor.u32 %v35, 2147483648
  %v90 = vxor.u32 %v36, 2147483648
  %v91 = vxor.u32 %v37, 2147483648
  %v92 = vxor.u32 %v38, 2147483648
  %v93 = vxor.u32 %v39, 2147483648
  %v94 = vxor.u32 %v40, 2147483648
  %v95 = vxor.u32 %v41, 2147483648
  %v96 = vxor.u32 %v42, 2147483648
  %v97 = vxor.u32 %v43, 2147483648
  %v98 = vxor.u32 %v44, 2147483648
  %v99 = vxor.u32 %v45, 2147483648
  %v100 = vxor.u32 %v46, 2147483648
  %v101 = vxor.u32 %v47, 2147483648
  %v102 = vxor.u32 %v48, 2147483648
  %v103 = vxor.u32 %v49, 2147483648
  %v104 = vxor.u32 %v50, 2147483648
  %v105 = vxor.u32 %v51, 2147483648
  %v106 = vxor.u32 %v52, 2147483648
  %v107 = vxor.u32 %v53, 2147483648
  %v108 = vxor.u32 %v54, 2147483648
  %v109 = vxor.u32 %v55, 2147483648
  %v110 = vxor.u32 %v56, 2147483648
  %v111 = vxor.u32 %v57, 2147483648
  %v112 = vxor.u32 %v58, 2147483648
  %v113 = vxor.u32 %v59, 2147483648
  %v114 = vxor.u32 %v60, 2147483648
  %v115 = vxor.u32 %v61, 2147483648
  %v116 = vxor.u32 %v62, 2147483648
  %v117 = vxor.u32 %v63, 2147483648
  %v118 = vxor.u32 %v64, 2147483648
  %v119 = vmul.f32 %v65, 1.442695
  %v120 = vpow.pop %v119
  %v121 = vmul.f32 %v66, 1.442695
  %v122 = vpow.pop %v121
  %v123 = vmul.f32 %v67, 1.442695
  %v124 = vpow.pop %v123
  %v125 = vmul.f32 %v68, 1.442695
  %v126 = vpow.pop %v125
  %v127 = vmul.f32 %v69, 1.442695
  %v128 = vpow.pop %v127
  %v129 = vmul.f32 %v70, 1.442695
  %v130 = vpow.pop %v129
  %v131 = vmul.f32 %v71, 1.442695
  %v132 = vpow.pop %v131
  %v133 = vmul.f32 %v72, 1.442695
  %v134 = vpow.pop %v133
  %v135 = vmul.f32 %v73, 1.442695
  %v136 = vpow.pop %v135
  %v137 = vmul.f32 %v74, 1.442695
  %v138 = vpow.pop %v137
  %v139 = vmul.f32 %v75, 1.442695
  %v140 = vpow.pop %v139
  %v141 = vmul.f32 %v76, 1.442695
  %v142 = vpow.pop %v141
  %v143 = vmul.f32 %v77, 1.442695
  %v144 = vpow.pop %v143
  %v145 = vmul.f32 %v78, 1.442695
  %v146 = vpow.pop %v145
  %v147 = vmul.f32 %v79, 1.442695
  %v148 = vpow.pop %v147
  %v149 = vmul.f32 %v80, 1.442695
  %v150 = vpow.pop %v149
  %v151 = vmul.f32 %v81, 1.442695
  %v152 = vpow.pop %v151
  %v153 = vmul.f32 %v82, 1.442695
  %v154 = vpow.pop %v153
  %v155 = vmul.f32 %v83, 1.442695
  %v156 = vpow.pop %v155
  %v157 = vmul.f32 %v84, 1.442695
  %v158 = vpow.pop %v157
  %v159 = vmul.f32 %v85, 1.442695
  %v160 = vpow.pop %v159
  %v161 = vmul.f32 %v86, 1.442695
  %v162 = vpow.pop %v161
  %v163 = vmul.f32 %v87, 1.442695
  %v164 = vpow.pop %v163
  %v165 = vmul.f32 %v88, 1.442695
  %v166 = vpow.pop %v165
  %v167 = vmul.f32 %v89, 1.442695
  %v168 = vpow.pop %v167
  %v169 = vmul.f32 %v90, 1.442695
  %v170 = vpow.pop %v169
  %v171 = vmul.f32 %v91, 1.442695
  %v172 = vpow.pop %v171
  %v173 = vmul.f32 %v92, 1.442695
  %v174 = vpow.pop %v173
  %v175 = vmul.f32 %v93, 1.442695
  %v176 = vpow.pop %v175
  %v177 = vmul.f32 %v94, 1.442695
  %v178 = vpow.pop %v177
  %v179 = vmul.f32 %v95, 1.442695
  %v180 = vpow.pop %v179
  %v181 = vmul.f32 %v96, 1.442695
  %v182 = vpow.pop %v181
  %v183 = vmul.f32 %v97, 1.442695
  %v184 = vpow.pop %v183
  %v185 = vmul.f32 %v98, 1.442695
  %v186 = vpow.pop %v185
  %v187 = vmul.f32 %v99, 1.442695
  %v188 = vpow.pop %v187
  %v189 = vmul.f32 %v100, 1.442695
  %v190 = vpow.pop %v189
  %v191 = vmul.f32 %v101, 1.442695
  %v192 = vpow.pop %v191
  %v193 = vmul.f32 %v102, 1.442695
  %v194 = vpow.pop %v193
  %v195 = vmul.f32 %v103, 1.442695
  %v196 = vpow.pop %v195
  %v197 = vmul.f32 %v104, 1.442695
  %v198 = vpow.pop %v197
  %v199 = vmul.f32 %v105, 1.442695
  %v200 = vpow.pop %v199
  %v201 = vmul.f32 %v106, 1.442695
  %v202 = vpow.pop %v201
  %v203 = vmul.f32 %v107, 1.442695
  %v204 = vpow.pop %v203
  %v205 = vmul.f32 %v108, 1.442695
  %v206 = vpow.pop %v205
  %v207 = vmul.f32 %v109, 1.442695
  %v208 = vpow.pop %v207
  %v209 = vmul.f32 %v110, 1.442695
  %v210 = vpow.pop %v209
  %v211 = vmul.f32 %v111, 1.442695
  %v212 = vpow.pop %v211
  %v213 = vmul.f32 %v112, 1.442695
  %v214 = vpow.pop %v213
  %v215 = vmul.f32 %v113, 1.442695
  %v216 = vpow.pop %v215
  %v217 = vmul.f32 %v114, 1.442695
  %v218 = vpow.pop %v217
  %v219 = vmul.f32 %v115, 1.442695
  %v220 = vpow.pop %v219
  %v221 = vmul.f32 %v116, 1.442695
  %v222 = vpow.pop %v221
  %v223 = vmul.f32 %v117, 1.442695
  %v224 = vpow.pop %v223
  %v225 = vmul.f32 %v118, 1.442695
  %v226 = vpow.pop %v225
  %v227 = vadd.f32 %v120, 1.0
  %v228 = vadd.f32 %v122, 1.0
  %v229 = vadd.f32 %v124, 1.0
  %v230 = vadd.f32 %v126, 1.0
  %v231 = vadd.f32 %v128, 1.0
  %v232 = vadd.f32 %v130, 1.0
  %v233 = vadd.f32 %v132, 1.0
  %v234 = vadd.f32 %v134, 1.0
  %v235 = vadd.f32 %v136, 1.0
  %v236 = vadd.f32 %v138, 1.0
  %v237 = vadd.f32 %v140, 1.0
  %v238 = vadd.f32 %v142, 1.0
  %v239 = vadd.f32 %v144, 1.0
  %v240 = vadd.f32 %v146, 1.0
  %v241 = vadd.f32 %v148, 1.0
  %v242 = vadd.f32 %v150, 1.0
  %v243 = vadd.f32 %v152, 1.0
  %v244 = vadd.f32 %v154, 1.0
  %v245 = vadd.f32 %v156, 1.0
  %v246 = vadd.f32 %v158, 1.0
  %v247 = vadd.f32 %v160, 1.0
  %v248 = vadd.f32 %v162, 1.0
  %v249 = vadd.f32 %v164, 1.0
  %v250 = vadd.f32 %v166, 1.0
  %v251 = vadd.f32 %v168, 1.0
  %v252 = vadd.f32 %v170, 1.0
  %v253 = vadd.f32 %v172, 1.0
  %v254 = vadd.f32 %v174, 1.0
  %v255 = vadd.f32 %v176, 1.0
  %v256 = vadd.f32 %v178, 1.0
  %v257 = vadd.f32 %v180, 1.0
  %v258 = vadd.f32 %v182, 1.0
  %v259 = vadd.f32 %v184, 1.0
  %v260 = vadd.f32 %v186, 1.0
  %v261 = vadd.f32 %v188, 1.0
  %v262 = vadd.f32 %v190, 1.0
  %v263 = vadd.f32 %v192, 1.0
  %v264 = vadd.f32 %v194, 1.0
  %v265 = vadd.f32 %v196, 1.0
  %v266 = vadd.f32 %v198, 1.0
  %v267 = vadd.f32 %v200, 1.0
  %v268 = vadd.f32 %v202, 1.0
  %v269 = vadd.f32 %v204, 1.0
  %v270 = vadd.f32 %v206, 1.0
  %v271 = vadd.f32 %v208, 1.0
  %v272 = vadd.f32 %v210, 1.0
  %v273 = vadd.f32 %v212, 1.0
  %v274 = vadd.f32 %v214, 1.0
  %v275 = vadd.f32 %v216, 1.0
  %v276 = vadd.f32 %v218, 1.0
  %v277 = vadd.f32 %v220, 1.0
  %v278 = vadd.f32 %v222, 1.0
  %v279 = vadd.f32 %v224, 1.0
  %v280 = vadd.f32 %v226, 1.0
  %v281 = vrcp.pop %v227
  %v282 = vmul.f32 1.0, %v281
  %v283 = vrcp.pop %v228
  %v284 = vmul.f32 1.0, %v283
  %v285 = vrcp.pop %v229
  %v286 = vmul.f32 1.0, %v285
  %v287 = vrcp.pop %v230
  %v288 = vmul.f32 1.0, %v287
  %v289 = vrcp.pop %v231
  %v290 = vmul.f32 1.0, %v289
  %v291 = vrcp.pop %v232
  %v292 = vmul.f32 1.0, %v291
  %v293 = vrcp.pop %v233
  %v294 = vmul.f32 1.0, %v293
  %v295 = vrcp.pop %v234
  %v296 = vmul.f32 1.0, %v295
  %v297 = vrcp.pop %v235
  %v298 = vmul.f32 1.0, %v297
  %v299 = vrcp.pop %v236
  %v300 = vmul.f32 1.0, %v299
  %v301 = vrcp.pop %v237
  %v302 = vmul.f32 1.0, %v301
  %v303 = vrcp.pop %v238
  %v304 = vmul.f32 1.0, %v303
  %v305 = vrcp.pop %v239
  %v306 = vmul.f32 1.0, %v305
  %v307 = vrcp.pop %v240
  %v308 = vmul.f32 1.0, %v307
  %v309 = vrcp.pop %v241
  %v310 = vmul.f32 1.0, %v309
  %v311 = vrcp.pop %v242
  %v312 = vmul.f32 1.0, %v311
  %v313 = vrcp.pop %v243
  %v314 = vmul.f32 1.0, %v313
  %v315 = vrcp.pop %v244
  %v316 = vmul.f32 1.0, %v315
  %v317 = vrcp.pop %v245
  %v318 = vmul.f32 1.0, %v317
  %v319 = vrcp.pop %v246
  %v320 = vmul.f32 1.0, %v319
  %v321 = vrcp.pop %v247
  %v322 = vmul.f32 1.0, %v321
  %v323 = vrcp.pop %v248
  %v324 = vmul.f32 1.0, %v323
  %v325 = vrcp.pop %v249
  %v326 = vmul.f32 1.0, %v325
  %v327 = vrcp.pop %v250
  %v328 = vmul.f32 1.0, %v327
  %v329 = vrcp.pop %v251
  %v330 = vmul.f32 1.0, %v329
  %v331 = vrcp.pop %v252
  %v332 = vmul.f32 1.0, %v331
  %v333 = vrcp.pop %v253
  %v334 = vmul.f32 1.0, %v333
  %v335 = vrcp.pop %v254
  %v336 = vmul.f32 1.0, %v335
  %v337 = vrcp.pop %v255
  %v338 = vmul.f32 1.0, %v337
  %v339 = vrcp.pop %v256
  %v340 = vmul.f32 1.0, %v339
  %v341 = vrcp.pop %v257
  %v342 = vmul.f32 1.0, %v341
  %v343 = vrcp.pop %v258
  %v344 = vmul.f32 1.0, %v343
  %v345 = vrcp.pop %v259
  %v346 = vmul.f32 1.0, %v345
  %v347 = vrcp.pop %v260
  %v348 = vmul.f32 1.0, %v347
  %v349 = vrcp.pop %v261
  %v350 = vmul.f32 1.0, %v349
  %v351 = vrcp.pop %v262
  %v352 = vmul.f32 1.0, %v351
  %v353 = vrcp.pop %v263
  %v354 = vmul.f32 1.0, %v353
  %v355 = vrcp.pop %v264
  %v356 = vmul.f32 1.0, %v355
  %v357 = vrcp.pop %v265
  %v358 = vmul.f32 1.0, %v357
  %v359 = vrcp.pop %v266
  %v360 = vmul.f32 1.0, %v359
  %v361 = vrcp.pop %v267
  %v362 = vmul.f32 1.0, %v361
  %v363 = vrcp.pop %v268
  %v364 = vmul.f32 1.0, %v363
  %v365 = vrcp.pop %v269
  %v366 = vmul.f32 1.0, %v365
  %v367 = vrcp.pop %v270
  %v368 = vmul.f32 1.0, %v367
  %v369 = vrcp.pop %v271
  %v370 = vmul.f32 1.0, %v369
  %v371 = vrcp.pop %v272
  %v372 = vmul.f32 1.0, %v371
  %v373 = vrcp.pop %v273
  %v374 = vmul.f32 1.0, %v373
  %v375 = vrcp.pop %v274
  %v376 = vmul.f32 1.0, %v375
  %v377 = vrcp.pop %v275
  %v378 = vmul.f32 1.0, %v377
  %v379 = vrcp.pop %v276
  %v380 = vmul.f32 1.0, %v379
  %v381 = vrcp.pop %v277
  %v382 = vmul.f32 1.0, %v381
  %v383 = vrcp.pop %v278
  %v384 = vmul.f32 1.0, %v383
  %v385 = vrcp.pop %v279
  %v386 = vmul.f32 1.0, %v385
  %v387 = vrcp.pop %v280
  %v388 = vmul.f32 1.0, %v387
  %v389 = vld [vmem:[%s1] sm:$0xff]
  %v390 = vld [vmem:[%s1 + $0x8] sm:$0xff]
  %v391 = vld [vmem:[%s1 + $0x10] sm:$0xff]
  %v392 = vld [vmem:[%s1 + $0x18] sm:$0xff]
  %v393 = vld [vmem:[%s1 + $0x20] sm:$0xff]
  %v394 = vld [vmem:[%s1 + $0x28] sm:$0xff]
  %v395 = vld [vmem:[%s1 + $0x30] sm:$0xff]
  %v396 = vld [vmem:[%s1 + $0x38] sm:$0xff]
  %v397 = vld [vmem:[%s1 + $0x40] sm:$0xff]
  %v398 = vld [vmem:[%s1 + $0x48] sm:$0xff]
  %v399 = vld [vmem:[%s1 + $0x50] sm:$0xff]
  %v400 = vld [vmem:[%s1 + $0x58] sm:$0xff]
  %v401 = vld [vmem:[%s1 + $0x60] sm:$0xff]
  %v402 = vld [vmem:[%s1 + $0x68] sm:$0xff]
  %v403 = vld [vmem:[%s1 + $0x70] sm:$0xff]
  %v404 = vld [vmem:[%s1 + $0x78] sm:$0xff]
  %v405 = vld [vmem:[%s1 + $0x80] sm:$0xff]
  %v406 = vld [vmem:[%s1 + $0x88] sm:$0xff]
  %v407 = vld [vmem:[%s1 + $0x90] sm:$0xff]
  %v408 = vld [vmem:[%s1 + $0x98] sm:$0xff]
  %v409 = vld [vmem:[%s1 + $0xa0] sm:$0xff]
  %v410 = vld [vmem:[%s1 + $0xa8] sm:$0xff]
  %v411 = vld [vmem:[%s1 + $0xb0] sm:$0xff]
  %v412 = vld [vmem:[%s1 + $0xb8] sm:$0xff]
  %v413 = vld [vmem:[%s1 + $0xc0] sm:$0xff]
  %v414 = vld [vmem:[%s1 + $0xc8] sm:$0xff]
  %v415 = vld [vmem:[%s1 + $0xd0] sm:$0xff]
  %v416 = vld [vmem:[%s1 + $0xd8] sm:$0xff]
  %v417 = vld [vmem:[%s1 + $0xe0] sm:$0xff]
  %v418 = vld [vmem:[%s1 + $0xe8] sm:$0xff]
  %v419 = vld [vmem:[%s1 + $0xf0] sm:$0xff]
  %v420 = vld [vmem:[%s1 + $0xf8] sm:$0xff]
  %v421 = vld [vmem:[%s1 + $0x100] sm:$0xff]
  %v422 = vld [vmem:[%s1 + $0x108] sm:$0xff]
  %v423 = vld [vmem:[%s1 + $0x110] sm:$0xff]
  %v424 = vld [vmem:[%s1 + $0x118] sm:$0xff]
  %v425 = vld [vmem:[%s1 + $0x120] sm:$0xff]
  %v426 = vld [vmem:[%s1 + $0x128] sm:$0xff]
  %v427 = vld [vmem:[%s1 + $0x130] sm:$0xff]
  %v428 = vld [vmem:[%s1 + $0x138] sm:$0xff]
  %v429 = vld [vmem:[%s1 + $0x140] sm:$0xff]
  %v430 = vld [vmem:[%s1 + $0x148] sm:$0xff]
  %v431 = vld [vmem:[%s1 + $0x150] sm:$0xff]
  %v432 = vld [vmem:[%s1 + $0x158] sm:$0xff]
  %v433 = vld [vmem:[%s1 + $0x160] sm:$0xff]
  %v434 = vld [vmem:[%s1 + $0x168] sm:$0xff]
  %v435 = vld [vmem:[%s1 + $0x170] sm:$0xff]
  %v436 = vld [vmem:[%s1 + $0x178] sm:$0xff]
  %v437 = vld [vmem:[%s1 + $0x180] sm:$0xff]
  %v438 = vld [vmem:[%s1 + $0x188] sm:$0xff]
  %v439 = vld [vmem:[%s1 + $0x190] sm:$0xff]
  %v440 = vld [vmem:[%s1 + $0x198] sm:$0xff]
  %v441 = vld [vmem:[%s1 + $0x1a0] sm:$0xff]
  %v442 = vld [vmem:[%s1 + $0x1a8] sm:$0xff]
  %v443 = vld [vmem:[%s1 + $0x1b0] sm:$0xff]
  %v444 = vld [vmem:[%s1 + $0x1b8] sm:$0xff]
  %v445 = vld [vmem:[%s1 + $0x1c0] sm:$0xff]
  %v446 = vld [vmem:[%s1 + $0x1c8] sm:$0xff]
  %v447 = vld [vmem:[%s1 + $0x1d0] sm:$0xff]
  %v448 = vld [vmem:[%s1 + $0x1d8] sm:$0xff]
  %v449 = vld [vmem:[%s1 + $0x1e0] sm:$0xff]
  %v450 = vld [vmem:[%s1 + $0x1e8] sm:$0xff]
  %v451 = vld [vmem:[%s1 + $0x1f0] sm:$0xff]
  %v452 = vld [vmem:[%s1 + $0x1f8] sm:$0xff]
  %v453 = vld [vmem:[%s1 + $0x200] sm:$0xff]
  %v454 = vld [vmem:[%s1 + $0x208] sm:$0xff]
  %v455 = vld [vmem:[%s1 + $0x210] sm:$0xff]
  %v456 = vld [vmem:[%s1 + $0x218] sm:$0xff]
  %v457 = vld [vmem:[%s1 + $0x220] sm:$0xff]
  %v458 = vld [vmem:[%s1 + $0x228] sm:$0xff]
  %v459 = vld [vmem:[%s1 + $0x230] sm:$0xff]
  %v460 = vld [vmem:[%s1 + $0x238] sm:$0xff]
  %v461 = vld [vmem:[%s1 + $0x240] sm:$0xff]
  %v462 = vld [vmem:[%s1 + $0x248] sm:$0xff]
  %v463 = vld [vmem:[%s1 + $0x250] sm:$0xff]
  %v464 = vld [vmem:[%s1 + $0x258] sm:$0xff]
  %v465 = vld [vmem:[%s1 + $0x260] sm:$0xff]
  %v466 = vld [vmem:[%s1 + $0x268] sm:$0xff]
  %v467 = vld [vmem:[%s1 + $0x270] sm:$0xff]
  %v468 = vld [vmem:[%s1 + $0x278] sm:$0xff]
  %v469 = vld [vmem:[%s1 + $0x280] sm:$0xff]
  %v470 = vld [vmem:[%s1 + $0x288] sm:$0xff]
  %v471 = vld [vmem:[%s1 + $0x290] sm:$0xff]
  %v472 = vld [vmem:[%s1 + $0x298] sm:$0xff]
  %v473 = vld [vmem:[%s1 + $0x2a0] sm:$0xff]
  %v474 = vld [vmem:[%s1 + $0x2a8] sm:$0xff]
  %v475 = vld [vmem:[%s1 + $0x2b0] sm:$0xff]
  %v476 = vld [vmem:[%s1 + $0x2b8] sm:$0xff]
  %v477 = vld [vmem:[%s1 + $0x2c0] sm:$0xff]
  %v478 = vld [vmem:[%s1 + $0x2c8] sm:$0xff]
  %v479 = vld [vmem:[%s1 + $0x2d0] sm:$0xff]
  %v480 = vld [vmem:[%s1 + $0x2d8] sm:$0xff]
  %v481 = vld [vmem:[%s1 + $0x2e0] sm:$0xff]
  %v482 = vld [vmem:[%s1 + $0x2e8] sm:$0xff]
  %v483 = vld [vmem:[%s1 + $0x2f0] sm:$0xff]
  %v484 = vld [vmem:[%s1 + $0x2f8] sm:$0xff]
  %v485 = vld [vmem:[%s1 + $0x300] sm:$0xff]
  %v486 = vld [vmem:[%s1 + $0x308] sm:$0xff]
  %v487 = vld [vmem:[%s1 + $0x310] sm:$0xff]
  %v488 = vld [vmem:[%s1 + $0x318] sm:$0xff]
  %v489 = vld [vmem:[%s1 + $0x320] sm:$0xff]
  %v490 = vld [vmem:[%s1 + $0x328] sm:$0xff]
  %v491 = vld [vmem:[%s1 + $0x330] sm:$0xff]
  %v492 = vld [vmem:[%s1 + $0x338] sm:$0xff]
  %v493 = vld [vmem:[%s1 + $0x340] sm:$0xff]
  %v494 = vld [vmem:[%s1 + $0x348] sm:$0xff]
  %v495 = vld [vmem:[%s1 + $0x350] sm:$0xff]
  %v496 = vld [vmem:[%s1 + $0x358] sm:$0xff]
  %498 = vset.pattern.permute.xlu0 0
  %499 = vperm.xlu0 %498, %v282
  %v500 = vpop.permute.xlu0 %499
  %503 = vset.pattern.permute.xlu0 0
  %504 = vperm.xlu0 %503, %v284
  %v505 = vpop.permute.xlu0 %504
  %508 = vset.pattern.permute.xlu0 0
  %509 = vperm.xlu0 %508, %v286
  %v510 = vpop.permute.xlu0 %509
  %513 = vset.pattern.permute.xlu0 0
  %514 = vperm.xlu0 %513, %v288
  %v515 = vpop.permute.xlu0 %514
  %518 = vset.pattern.permute.xlu0 0
  %519 = vperm.xlu0 %518, %v290
  %v520 = vpop.permute.xlu0 %519
  %523 = vset.pattern.permute.xlu0 0
  %524 = vperm.xlu0 %523, %v292
  %v525 = vpop.permute.xlu0 %524
  %528 = vset.pattern.permute.xlu0 0
  %529 = vperm.xlu0 %528, %v294
  %v530 = vpop.permute.xlu0 %529
  %533 = vset.pattern.permute.xlu0 0
  %534 = vperm.xlu0 %533, %v296
  %v535 = vpop.permute.xlu0 %534
  %538 = vset.pattern.permute.xlu0 0
  %539 = vperm.xlu0 %538, %v298
  %v540 = vpop.permute.xlu0 %539
  %543 = vset.pattern.permute.xlu0 0
  %544 = vperm.xlu0 %543, %v300
  %v545 = vpop.permute.xlu0 %544
  %548 = vset.pattern.permute.xlu0 0
  %549 = vperm.xlu0 %548, %v302
  %v550 = vpop.permute.xlu0 %549
  %553 = vset.pattern.permute.xlu0 0
  %554 = vperm.xlu0 %553, %v304
  %v555 = vpop.permute.xlu0 %554
  %558 = vset.pattern.permute.xlu0 0
  %559 = vperm.xlu0 %558, %v306
  %v560 = vpop.permute.xlu0 %559
  %563 = vset.pattern.permute.xlu0 0
  %564 = vperm.xlu0 %563, %v308
  %v565 = vpop.permute.xlu0 %564
  %568 = vset.pattern.permute.xlu0 0
  %569 = vperm.xlu0 %568, %v310
  %v570 = vpop.permute.xlu0 %569
  %573 = vset.pattern.permute.xlu0 0
  %574 = vperm.xlu0 %573, %v312
  %v575 = vpop.permute.xlu0 %574
  %578 = vset.pattern.permute.xlu0 0
  %579 = vperm.xlu0 %578, %v314
  %v580 = vpop.permute.xlu0 %579
  %583 = vset.pattern.permute.xlu0 0
  %584 = vperm.xlu0 %583, %v316
  %v585 = vpop.permute.xlu0 %584
  %588 = vset.pattern.permute.xlu0 0
  %589 = vperm.xlu0 %588, %v318
  %v590 = vpop.permute.xlu0 %589
  %593 = vset.pattern.permute.xlu0 0
  %594 = vperm.xlu0 %593, %v320
  %v595 = vpop.permute.xlu0 %594
  %598 = vset.pattern.permute.xlu0 0
  %599 = vperm.xlu0 %598, %v322
  %v600 = vpop.permute.xlu0 %599
  %603 = vset.pattern.permute.xlu0 0
  %604 = vperm.xlu0 %603, %v324
  %v605 = vpop.permute.xlu0 %604
  %608 = vset.pattern.permute.xlu0 0
  %609 = vperm.xlu0 %608, %v326
  %v610 = vpop.permute.xlu0 %609
  %613 = vset.pattern.permute.xlu0 0
  %614 = vperm.xlu0 %613, %v328
  %v615 = vpop.permute.xlu0 %614
  %618 = vset.pattern.permute.xlu0 0
  %619 = vperm.xlu0 %618, %v330
  %v620 = vpop.permute.xlu0 %619
  %623 = vset.pattern.permute.xlu0 0
  %624 = vperm.xlu0 %623, %v332
  %v625 = vpop.permute.xlu0 %624
  %628 = vset.pattern.permute.xlu0 0
  %629 = vperm.xlu0 %628, %v334
  %v630 = vpop.permute.xlu0 %629
  %633 = vset.pattern.permute.xlu0 0
  %634 = vperm.xlu0 %633, %v336
  %v635 = vpop.permute.xlu0 %634
  %638 = vset.pattern.permute.xlu0 0
  %639 = vperm.xlu0 %638, %v338
  %v640 = vpop.permute.xlu0 %639
  %643 = vset.pattern.permute.xlu0 0
  %644 = vperm.xlu0 %643, %v340
  %v645 = vpop.permute.xlu0 %644
  %648 = vset.pattern.permute.xlu0 0
  %649 = vperm.xlu0 %648, %v342
  %v650 = vpop.permute.xlu0 %649
  %653 = vset.pattern.permute.xlu0 0
  %654 = vperm.xlu0 %653, %v344
  %v655 = vpop.permute.xlu0 %654
  %658 = vset.pattern.permute.xlu0 0
  %659 = vperm.xlu0 %658, %v346
  %v660 = vpop.permute.xlu0 %659
  %663 = vset.pattern.permute.xlu0 0
  %664 = vperm.xlu0 %663, %v348
  %v665 = vpop.permute.xlu0 %664
  %668 = vset.pattern.permute.xlu0 0
  %669 = vperm.xlu0 %668, %v350
  %v670 = vpop.permute.xlu0 %669
  %673 = vset.pattern.permute.xlu0 0
  %674 = vperm.xlu0 %673, %v352
  %v675 = vpop.permute.xlu0 %674
  %678 = vset.pattern.permute.xlu0 0
  %679 = vperm.xlu0 %678, %v354
  %v680 = vpop.permute.xlu0 %679
  %683 = vset.pattern.permute.xlu0 0
  %684 = vperm.xlu0 %683, %v356
  %v685 = vpop.permute.xlu0 %684
  %688 = vset.pattern.permute.xlu0 0
  %689 = vperm.xlu0 %688, %v358
  %v690 = vpop.permute.xlu0 %689
  %693 = vset.pattern.permute.xlu0 0
  %694 = vperm.xlu0 %693, %v360
  %v695 = vpop.permute.xlu0 %694
  %698 = vset.pattern.permute.xlu0 0
  %699 = vperm.xlu0 %698, %v362
  %v700 = vpop.permute.xlu0 %699
  %703 = vset.pattern.permute.xlu0 0
  %704 = vperm.xlu0 %703, %v364
  %v705 = vpop.permute.xlu0 %704
  %708 = vset.pattern.permute.xlu0 0
  %709 = vperm.xlu0 %708, %v366
  %v710 = vpop.permute.xlu0 %709
  %713 = vset.pattern.permute.xlu0 0
  %714 = vperm.xlu0 %713, %v368
  %v715 = vpop.permute.xlu0 %714
  %718 = vset.pattern.permute.xlu0 0
  %719 = vperm.xlu0 %718, %v370
  %v720 = vpop.permute.xlu0 %719
  %723 = vset.pattern.permute.xlu0 0
  %724 = vperm.xlu0 %723, %v372
  %v725 = vpop.permute.xlu0 %724
  %728 = vset.pattern.permute.xlu0 0
  %729 = vperm.xlu0 %728, %v374
  %v730 = vpop.permute.xlu0 %729
  %733 = vset.pattern.permute.xlu0 0
  %734 = vperm.xlu0 %733, %v376
  %v735 = vpop.permute.xlu0 %734
  %738 = vset.pattern.permute.xlu0 0
  %739 = vperm.xlu0 %738, %v378
  %v740 = vpop.permute.xlu0 %739
  %743 = vset.pattern.permute.xlu0 0
  %744 = vperm.xlu0 %743, %v380
  %v745 = vpop.permute.xlu0 %744
  %748 = vset.pattern.permute.xlu0 0
  %749 = vperm.xlu0 %748, %v382
  %v750 = vpop.permute.xlu0 %749
  %753 = vset.pattern.permute.xlu0 0
  %754 = vperm.xlu0 %753, %v384
  %v755 = vpop.permute.xlu0 %754
  %758 = vset.pattern.permute.xlu0 0
  %759 = vperm.xlu0 %758, %v386
  %v760 = vpop.permute.xlu0 %759
  %763 = vset.pattern.permute.xlu0 0
  %764 = vperm.xlu0 %763, %v388
  %v765 = vpop.permute.xlu0 %764
  %v767 = vmul.f32 %v389, %v500
  %v768 = vmul.f32 %v390, %v500
  %v769 = vmul.f32 %v391, %v505
  %v770 = vmul.f32 %v392, %v505
  %v771 = vmul.f32 %v393, %v510
  %v772 = vmul.f32 %v394, %v510
  %v773 = vmul.f32 %v395, %v515
  %v774 = vmul.f32 %v396, %v515
  %v775 = vmul.f32 %v397, %v520
  %v776 = vmul.f32 %v398, %v520
  %v777 = vmul.f32 %v399, %v525
  %v778 = vmul.f32 %v400, %v525
  %v779 = vmul.f32 %v401, %v530
  %v780 = vmul.f32 %v402, %v530
  %v781 = vmul.f32 %v403, %v535
  %v782 = vmul.f32 %v404, %v535
  %v783 = vmul.f32 %v405, %v540
  %v784 = vmul.f32 %v406, %v540
  %v785 = vmul.f32 %v407, %v545
  %v786 = vmul.f32 %v408, %v545
  %v787 = vmul.f32 %v409, %v550
  %v788 = vmul.f32 %v410, %v550
  %v789 = vmul.f32 %v411, %v555
  %v790 = vmul.f32 %v412, %v555
  %v791 = vmul.f32 %v413, %v560
  %v792 = vmul.f32 %v414, %v560
  %v793 = vmul.f32 %v415, %v565
  %v794 = vmul.f32 %v416, %v565
  %v795 = vmul.f32 %v417, %v570
  %v796 = vmul.f32 %v418, %v570
  %v797 = vmul.f32 %v419, %v575
  %v798 = vmul.f32 %v420, %v575
  %v799 = vmul.f32 %v421, %v580
  %v800 = vmul.f32 %v422, %v580
  %v801 = vmul.f32 %v423, %v585
  %v802 = vmul.f32 %v424, %v585
  %v803 = vmul.f32 %v425, %v590
  %v804 = vmul.f32 %v426, %v590
  %v805 = vmul.f32 %v427, %v595
  %v806 = vmul.f32 %v428, %v595
  %v807 = vmul.f32 %v429, %v600
  %v808 = vmul.f32 %v430, %v600
  %v809 = vmul.f32 %v431, %v605
  %v810 = vmul.f32 %v432, %v605
  %v811 = vmul.f32 %v433, %v610
  %v812 = vmul.f32 %v434, %v610
  %v813 = vmul.f32 %v435, %v615
  %v814 = vmul.f32 %v436, %v615
  %v815 = vmul.f32 %v437, %v620
  %v816 = vmul.f32 %v438, %v620
  %v817 = vmul.f32 %v439, %v625
  %v818 = vmul.f32 %v440, %v625
  %v819 = vmul.f32 %v441, %v630
  %v820 = vmul.f32 %v442, %v630
  %v821 = vmul.f32 %v443, %v635
  %v822 = vmul.f32 %v444, %v635
  %v823 = vmul.f32 %v445, %v640
  %v824 = vmul.f32 %v446, %v640
  %v825 = vmul.f32 %v447, %v645
  %v826 = vmul.f32 %v448, %v645
  %v827 = vmul.f32 %v449, %v650
  %v828 = vmul.f32 %v450, %v650
  %v829 = vmul.f32 %v451, %v655
  %v830 = vmul.f32 %v452, %v655
  %v831 = vmul.f32 %v453, %v660
  %v832 = vmul.f32 %v454, %v660
  %v833 = vmul.f32 %v455, %v665
  %v834 = vmul.f32 %v456, %v665
  %v835 = vmul.f32 %v457, %v670
  %v836 = vmul.f32 %v458, %v670
  %v837 = vmul.f32 %v459, %v675
  %v838 = vmul.f32 %v460, %v675
  %v839 = vmul.f32 %v461, %v680
  %v840 = vmul.f32 %v462, %v680
  %v841 = vmul.f32 %v463, %v685
  %v842 = vmul.f32 %v464, %v685
  %v843 = vmul.f32 %v465, %v690
  %v844 = vmul.f32 %v466, %v690
  %v845 = vmul.f32 %v467, %v695
  %v846 = vmul.f32 %v468, %v695
  %v847 = vmul.f32 %v469, %v700
  %v848 = vmul.f32 %v470, %v700
  %v849 = vmul.f32 %v471, %v705
  %v850 = vmul.f32 %v472, %v705
  %v851 = vmul.f32 %v473, %v710
  %v852 = vmul.f32 %v474, %v710
  %v853 = vmul.f32 %v475, %v715
  %v854 = vmul.f32 %v476, %v715
  %v855 = vmul.f32 %v477, %v720
  %v856 = vmul.f32 %v478, %v720
  %v857 = vmul.f32 %v479, %v725
  %v858 = vmul.f32 %v480, %v725
  %v859 = vmul.f32 %v481, %v730
  %v860 = vmul.f32 %v482, %v730
  %v861 = vmul.f32 %v483, %v735
  %v862 = vmul.f32 %v484, %v735
  %v863 = vmul.f32 %v485, %v740
  %v864 = vmul.f32 %v486, %v740
  %v865 = vmul.f32 %v487, %v745
  %v866 = vmul.f32 %v488, %v745
  %v867 = vmul.f32 %v489, %v750
  %v868 = vmul.f32 %v490, %v750
  %v869 = vmul.f32 %v491, %v755
  %v870 = vmul.f32 %v492, %v755
  %v871 = vmul.f32 %v493, %v760
  %v872 = vmul.f32 %v494, %v760
  %v873 = vmul.f32 %v495, %v765
  %v874 = vmul.f32 %v496, %v765
  %875 = vst [vmem:[%s2] sm:$0xff] %v767
  %vm876 = vcmask 556032
  %877 = vst.msk [vmem:[%s2 + $0x8] sm:$0xff] %vm876, %v768
  %878 = vst [vmem:[%s2 + $0x10] sm:$0xff] %v769
  %879 = vst.msk [vmem:[%s2 + $0x18] sm:$0xff] %vm876, %v770
  %880 = vst [vmem:[%s2 + $0x20] sm:$0xff] %v771
  %881 = vst.msk [vmem:[%s2 + $0x28] sm:$0xff] %vm876, %v772
  %882 = vst [vmem:[%s2 + $0x30] sm:$0xff] %v773
  %883 = vst.msk [vmem:[%s2 + $0x38] sm:$0xff] %vm876, %v774
  %884 = vst [vmem:[%s2 + $0x40] sm:$0xff] %v775
  %885 = vst.msk [vmem:[%s2 + $0x48] sm:$0xff] %vm876, %v776
  %886 = vst [vmem:[%s2 + $0x50] sm:$0xff] %v777
  %887 = vst.msk [vmem:[%s2 + $0x58] sm:$0xff] %vm876, %v778
  %888 = vst [vmem:[%s2 + $0x60] sm:$0xff] %v779
  %889 = vst.msk [vmem:[%s2 + $0x68] sm:$0xff] %vm876, %v780
  %890 = vst [vmem:[%s2 + $0x70] sm:$0xff] %v781
  %891 = vst.msk [vmem:[%s2 + $0x78] sm:$0xff] %vm876, %v782
  %892 = vst [vmem:[%s2 + $0x80] sm:$0xff] %v783
  %893 = vst.msk [vmem:[%s2 + $0x88] sm:$0xff] %vm876, %v784
  %894 = vst [vmem:[%s2 + $0x90] sm:$0xff] %v785
  %895 = vst.msk [vmem:[%s2 + $0x98] sm:$0xff] %vm876, %v786
  %896 = vst [vmem:[%s2 + $0xa0] sm:$0xff] %v787
  %897 = vst.msk [vmem:[%s2 + $0xa8] sm:$0xff] %vm876, %v788
  %898 = vst [vmem:[%s2 + $0xb0] sm:$0xff] %v789
  %899 = vst.msk [vmem:[%s2 + $0xb8] sm:$0xff] %vm876, %v790
  %900 = vst [vmem:[%s2 + $0xc0] sm:$0xff] %v791
  %901 = vst.msk [vmem:[%s2 + $0xc8] sm:$0xff] %vm876, %v792
  %902 = vst [vmem:[%s2 + $0xd0] sm:$0xff] %v793
  %903 = vst.msk [vmem:[%s2 + $0xd8] sm:$0xff] %vm876, %v794
  %904 = vst [vmem:[%s2 + $0xe0] sm:$0xff] %v795
  %905 = vst.msk [vmem:[%s2 + $0xe8] sm:$0xff] %vm876, %v796
  %906 = vst [vmem:[%s2 + $0xf0] sm:$0xff] %v797
  %907 = vst.msk [vmem:[%s2 + $0xf8] sm:$0xff] %vm876, %v798
  %908 = vst [vmem:[%s2 + $0x100] sm:$0xff] %v799
  %909 = vst.msk [vmem:[%s2 + $0x108] sm:$0xff] %vm876, %v800
  %910 = vst [vmem:[%s2 + $0x110] sm:$0xff] %v801
  %911 = vst.msk [vmem:[%s2 + $0x118] sm:$0xff] %vm876, %v802
  %912 = vst [vmem:[%s2 + $0x120] sm:$0xff] %v803
  %913 = vst.msk [vmem:[%s2 + $0x128] sm:$0xff] %vm876, %v804
  %914 = vst [vmem:[%s2 + $0x130] sm:$0xff] %v805
  %915 = vst.msk [vmem:[%s2 + $0x138] sm:$0xff] %vm876, %v806
  %916 = vst [vmem:[%s2 + $0x140] sm:$0xff] %v807
  %917 = vst.msk [vmem:[%s2 + $0x148] sm:$0xff] %vm876, %v808
  %918 = vst [vmem:[%s2 + $0x150] sm:$0xff] %v809
  %919 = vst.msk [vmem:[%s2 + $0x158] sm:$0xff] %vm876, %v810
  %920 = vst [vmem:[%s2 + $0x160] sm:$0xff] %v811
  %921 = vst.msk [vmem:[%s2 + $0x168] sm:$0xff] %vm876, %v812
  %922 = vst [vmem:[%s2 + $0x170] sm:$0xff] %v813
  %923 = vst.msk [vmem:[%s2 + $0x178] sm:$0xff] %vm876, %v814
  %924 = vst [vmem:[%s2 + $0x180] sm:$0xff] %v815
  %925 = vst.msk [vmem:[%s2 + $0x188] sm:$0xff] %vm876, %v816
  %926 = vst [vmem:[%s2 + $0x190] sm:$0xff] %v817
  %927 = vst.msk [vmem:[%s2 + $0x198] sm:$0xff] %vm876, %v818
  %928 = vst [vmem:[%s2 + $0x1a0] sm:$0xff] %v819
  %929 = vst.msk [vmem:[%s2 + $0x1a8] sm:$0xff] %vm876, %v820
  %930 = vst [vmem:[%s2 + $0x1b0] sm:$0xff] %v821
  %931 = vst.msk [vmem:[%s2 + $0x1b8] sm:$0xff] %vm876, %v822
  %932 = vst [vmem:[%s2 + $0x1c0] sm:$0xff] %v823
  %933 = vst.msk [vmem:[%s2 + $0x1c8] sm:$0xff] %vm876, %v824
  %934 = vst [vmem:[%s2 + $0x1d0] sm:$0xff] %v825
  %935 = vst.msk [vmem:[%s2 + $0x1d8] sm:$0xff] %vm876, %v826
  %936 = vst [vmem:[%s2 + $0x1e0] sm:$0xff] %v827
  %937 = vst.msk [vmem:[%s2 + $0x1e8] sm:$0xff] %vm876, %v828
  %938 = vst [vmem:[%s2 + $0x1f0] sm:$0xff] %v829
  %939 = vst.msk [vmem:[%s2 + $0x1f8] sm:$0xff] %vm876, %v830
  %940 = vst [vmem:[%s2 + $0x200] sm:$0xff] %v831
  %941 = vst.msk [vmem:[%s2 + $0x208] sm:$0xff] %vm876, %v832
  %942 = vst [vmem:[%s2 + $0x210] sm:$0xff] %v833
  %943 = vst.msk [vmem:[%s2 + $0x218] sm:$0xff] %vm876, %v834
  %944 = vst [vmem:[%s2 + $0x220] sm:$0xff] %v835
  %945 = vst.msk [vmem:[%s2 + $0x228] sm:$0xff] %vm876, %v836
  %946 = vst [vmem:[%s2 + $0x230] sm:$0xff] %v837
  %947 = vst.msk [vmem:[%s2 + $0x238] sm:$0xff] %vm876, %v838
  %948 = vst [vmem:[%s2 + $0x240] sm:$0xff] %v839
  %949 = vst.msk [vmem:[%s2 + $0x248] sm:$0xff] %vm876, %v840
  %950 = vst [vmem:[%s2 + $0x250] sm:$0xff] %v841
  %951 = vst.msk [vmem:[%s2 + $0x258] sm:$0xff] %vm876, %v842
  %952 = vst [vmem:[%s2 + $0x260] sm:$0xff] %v843
  %953 = vst.msk [vmem:[%s2 + $0x268] sm:$0xff] %vm876, %v844
  %954 = vst [vmem:[%s2 + $0x270] sm:$0xff] %v845
  %955 = vst.msk [vmem:[%s2 + $0x278] sm:$0xff] %vm876, %v846
  %956 = vst [vmem:[%s2 + $0x280] sm:$0xff] %v847
  %957 = vst.msk [vmem:[%s2 + $0x288] sm:$0xff] %vm876, %v848
  %958 = vst [vmem:[%s2 + $0x290] sm:$0xff] %v849
  %959 = vst.msk [vmem:[%s2 + $0x298] sm:$0xff] %vm876, %v850
  %960 = vst [vmem:[%s2 + $0x2a0] sm:$0xff] %v851
  %961 = vst.msk [vmem:[%s2 + $0x2a8] sm:$0xff] %vm876, %v852
  %962 = vst [vmem:[%s2 + $0x2b0] sm:$0xff] %v853
  %963 = vst.msk [vmem:[%s2 + $0x2b8] sm:$0xff] %vm876, %v854
  %964 = vst [vmem:[%s2 + $0x2c0] sm:$0xff] %v855
  %965 = vst.msk [vmem:[%s2 + $0x2c8] sm:$0xff] %vm876, %v856
  %966 = vst [vmem:[%s2 + $0x2d0] sm:$0xff] %v857
  %967 = vst.msk [vmem:[%s2 + $0x2d8] sm:$0xff] %vm876, %v858
  %968 = vst [vmem:[%s2 + $0x2e0] sm:$0xff] %v859
  %969 = vst.msk [vmem:[%s2 + $0x2e8] sm:$0xff] %vm876, %v860
  %970 = vst [vmem:[%s2 + $0x2f0] sm:$0xff] %v861
  %971 = vst.msk [vmem:[%s2 + $0x2f8] sm:$0xff] %vm876, %v862
  %972 = vst [vmem:[%s2 + $0x300] sm:$0xff] %v863
  %973 = vst.msk [vmem:[%s2 + $0x308] sm:$0xff] %vm876, %v864
  %974 = vst [vmem:[%s2 + $0x310] sm:$0xff] %v865
  %975 = vst.msk [vmem:[%s2 + $0x318] sm:$0xff] %vm876, %v866
  %976 = vst [vmem:[%s2 + $0x320] sm:$0xff] %v867
  %977 = vst.msk [vmem:[%s2 + $0x328] sm:$0xff] %vm876, %v868
  %978 = vst [vmem:[%s2 + $0x330] sm:$0xff] %v869
  %979 = vst.msk [vmem:[%s2 + $0x338] sm:$0xff] %vm876, %v870
  %980 = vst [vmem:[%s2 + $0x340] sm:$0xff] %v871
  %981 = vst.msk [vmem:[%s2 + $0x348] sm:$0xff] %vm876, %v872
  %982 = vst [vmem:[%s2 + $0x350] sm:$0xff] %v873
  %983 = vst.msk [vmem:[%s2 + $0x358] sm:$0xff] %vm876, %v874
  // Predicated region
  $region10: #{tpu_custom_call.1} parent=0 // pred_check
    _
  $region11: #{tpu_custom_call.1} parent=0 // pred_check_branch
    %985 = sbr.rel (0) target = $region13
  $region12: #{tpu_custom_call.1} parent=0 // pred_region
    _
  $region13: #{tpu_custom_call.1} parent=0 // pred_fallthru
    _
  // Predicated region
  $region14: #{tpu_custom_call.1} parent=0 // pred_check
    _
  $region15: #{tpu_custom_call.1} parent=0 // pred_check_branch
    %987 = sbr.rel (0) target = $region17
  $region16: #{tpu_custom_call.1} parent=0 // pred_region
    _
  $region17: #{tpu_custom_call.1} parent=0 // pred_fallthru
    _

// kernel: tpu_custom_call.1
$region0: #{tpu_custom_call.1}
  #allocation0 [shape = 'u32[]', space=smem, size = 0x4, offset = 0x4, fixed_abs, tag = 'smem constant byte address 0x4 - core index']
  #allocation1 [shape = 'u32[144,128]{1,0:T(1,128)}', space=vmem, size = 0x12000, scoped, tag = 'internal scratch']
  %s0 = inlined_call_operand.vmem [shape: f32[432,1], index: 0, kind: input, shape index: {}]
  %s1 = inlined_call_operand.vmem [shape: f32[432,196], index: 1, kind: input, shape index: {}]
  %s2 = inlined_call_operand.vmem [shape: f32[432,196], index: 2, kind: output, shape index: {}]
  %s3 = sld [smem:[#allocation0]]
  $region18: #{tpu_custom_call.1} parent=0
    _
  %s5 = ssub.s32 1, %s3
  %s6 = scalar_select 0, %s5, %s3
  // Predicated region
  $region2: #{tpu_custom_call.1} parent=0 // pred_check
    _
  $region3: #{tpu_custom_call.1} parent=0 // pred_check_branch
    %8 = sbr.rel (0) target = $region5
  $region4: #{tpu_custom_call.1} parent=0 // pred_region
    _
  $region5: #{tpu_custom_call.1} parent=0 // pred_fallthru
    _
  // Predicated region
  $region6: #{tpu_custom_call.1} parent=0 // pred_check
    _
  $region7: #{tpu_custom_call.1} parent=0 // pred_check_branch
    %10 = sbr.rel (0) target = $region9
  $region8: #{tpu_custom_call.1} parent=0 // pred_region
    _
  $region9: #{tpu_custom_call.1} parent=0 // pred_fallthru
    _
  %v11 = vld [vmem:[%s0] sm:$0xff]
  %v12 = vld [vmem:[%s0 + $0x8] sm:$0xff]
  %v13 = vld [vmem:[%s0 + $0x10] sm:$0xff]
  %v14 = vld [vmem:[%s0 + $0x18] sm:$0xff]
  %v15 = vld [vmem:[%s0 + $0x20] sm:$0xff]
  %v16 = vld [vmem:[%s0 + $0x28] sm:$0xff]
  %v17 = vld [vmem:[%s0 + $0x30] sm:$0xff]
  %v18 = vld [vmem:[%s0 + $0x38] sm:$0xff]
  %v19 = vld [vmem:[%s0 + $0x40] sm:$0xff]
  %v20 = vld [vmem:[%s0 + $0x48] sm:$0xff]
  %v21 = vld [vmem:[%s0 + $0x50] sm:$0xff]
  %v22 = vld [vmem:[%s0 + $0x58] sm:$0xff]
  %v23 = vld [vmem:[%s0 + $0x60] sm:$0xff]
  %v24 = vld [vmem:[%s0 + $0x68] sm:$0xff]
  %v25 = vld [vmem:[%s0 + $0x70] sm:$0xff]
  %v26 = vld [vmem:[%s0 + $0x78] sm:$0xff]
  %v27 = vld [vmem:[%s0 + $0x80] sm:$0xff]
  %v28 = vld [vmem:[%s0 + $0x88] sm:$0xff]
  %v29 = vld [vmem:[%s0 + $0x90] sm:$0xff]
  %v30 = vld [vmem:[%s0 + $0x98] sm:$0xff]
  %v31 = vld [vmem:[%s0 + $0xa0] sm:$0xff]
  %v32 = vld [vmem:[%s0 + $0xa8] sm:$0xff]
  %v33 = vld [vmem:[%s0 + $0xb0] sm:$0xff]
  %v34 = vld [vmem:[%s0 + $0xb8] sm:$0xff]
  %v35 = vld [vmem:[%s0 + $0xc0] sm:$0xff]
  %v36 = vld [vmem:[%s0 + $0xc8] sm:$0xff]
  %v37 = vld [vmem:[%s0 + $0xd0] sm:$0xff]
  %v38 = vld [vmem:[%s0 + $0xd8] sm:$0xff]
  %v39 = vld [vmem:[%s0 + $0xe0] sm:$0xff]
  %v40 = vld [vmem:[%s0 + $0xe8] sm:$0xff]
  %v41 = vld [vmem:[%s0 + $0xf0] sm:$0xff]
  %v42 = vld [vmem:[%s0 + $0xf8] sm:$0xff]
  %v43 = vld [vmem:[%s0 + $0x100] sm:$0xff]
  %v44 = vld [vmem:[%s0 + $0x108] sm:$0xff]
  %v45 = vld [vmem:[%s0 + $0x110] sm:$0xff]
  %v46 = vld [vmem:[%s0 + $0x118] sm:$0xff]
  %v47 = vld [vmem:[%s0 + $0x120] sm:$0xff]
  %v48 = vld [vmem:[%s0 + $0x128] sm:$0xff]
  %v49 = vld [vmem:[%s0 + $0x130] sm:$0xff]
  %v50 = vld [vmem:[%s0 + $0x138] sm:$0xff]
  %v51 = vld [vmem:[%s0 + $0x140] sm:$0xff]
  %v52 = vld [vmem:[%s0 + $0x148] sm:$0xff]
  %v53 = vld [vmem:[%s0 + $0x150] sm:$0xff]
  %v54 = vld [vmem:[%s0 + $0x158] sm:$0xff]
  %v55 = vld [vmem:[%s0 + $0x160] sm:$0xff]
  %v56 = vld [vmem:[%s0 + $0x168] sm:$0xff]
  %v57 = vld [vmem:[%s0 + $0x170] sm:$0xff]
  %v58 = vld [vmem:[%s0 + $0x178] sm:$0xff]
  %v59 = vld [vmem:[%s0 + $0x180] sm:$0xff]
  %v60 = vld [vmem:[%s0 + $0x188] sm:$0xff]
  %v61 = vld [vmem:[%s0 + $0x190] sm:$0xff]
  %v62 = vld [vmem:[%s0 + $0x198] sm:$0xff]
  %v63 = vld [vmem:[%s0 + $0x1a0] sm:$0xff]
  %v64 = vld [vmem:[%s0 + $0x1a8] sm:$0xff]
  %v65 = vxor.u32 %v11, 2147483648
  %v66 = vxor.u32 %v12, 2147483648
  %v67 = vxor.u32 %v13, 2147483648
  %v68 = vxor.u32 %v14, 2147483648
  %v69 = vxor.u32 %v15, 2147483648
  %v70 = vxor.u32 %v16, 2147483648
  %v71 = vxor.u32 %v17, 2147483648
  %v72 = vxor.u32 %v18, 2147483648
  %v73 = vxor.u32 %v19, 2147483648
  %v74 = vxor.u32 %v20, 2147483648
  %v75 = vxor.u32 %v21, 2147483648
  %v76 = vxor.u32 %v22, 2147483648
  %v77 = vxor.u32 %v23, 2147483648
  %v78 = vxor.u32 %v24, 2147483648
  %v79 = vxor.u32 %v25, 2147483648
  %v80 = vxor.u32 %v26, 2147483648
  %v81 = vxor.u32 %v27, 2147483648
  %v82 = vxor.u32 %v28, 2147483648
  %v83 = vxor.u32 %v29, 2147483648
  %v84 = vxor.u32 %v30, 2147483648
  %v85 = vxor.u32 %v31, 2147483648
  %v86 = vxor.u32 %v32, 2147483648
  %v87 = vxor.u32 %v33, 2147483648
  %v88 = vxor.u32 %v34, 2147483648
  %v89 = vxor.u32 %v35, 2147483648
  %v90 = vxor.u32 %v36, 2147483648
  %v91 = vxor.u32 %v37, 2147483648
  %v92 = vxor.u32 %v38, 2147483648
  %v93 = vxor.u32 %v39, 2147483648
  %v94 = vxor.u32 %v40, 2147483648
  %v95 = vxor.u32 %v41, 2147483648
  %v96 = vxor.u32 %v42, 2147483648
  %v97 = vxor.u32 %v43, 2147483648
  %v98 = vxor.u32 %v44, 2147483648
  %v99 = vxor.u32 %v45, 2147483648
  %v100 = vxor.u32 %v46, 2147483648
  %v101 = vxor.u32 %v47, 2147483648
  %v102 = vxor.u32 %v48, 2147483648
  %v103 = vxor.u32 %v49, 2147483648
  %v104 = vxor.u32 %v50, 2147483648
  %v105 = vxor.u32 %v51, 2147483648
  %v106 = vxor.u32 %v52, 2147483648
  %v107 = vxor.u32 %v53, 2147483648
  %v108 = vxor.u32 %v54, 2147483648
  %v109 = vxor.u32 %v55, 2147483648
  %v110 = vxor.u32 %v56, 2147483648
  %v111 = vxor.u32 %v57, 2147483648
  %v112 = vxor.u32 %v58, 2147483648
  %v113 = vxor.u32 %v59, 2147483648
  %v114 = vxor.u32 %v60, 2147483648
  %v115 = vxor.u32 %v61, 2147483648
  %v116 = vxor.u32 %v62, 2147483648
  %v117 = vxor.u32 %v63, 2147483648
  %v118 = vxor.u32 %v64, 2147483648
  %v119 = vmul.f32 %v65, 1.442695
  %v120 = vpow.pop %v119
  %v121 = vmul.f32 %v66, 1.442695
  %v122 = vpow.pop %v121
  %v123 = vmul.f32 %v67, 1.442695
  %v124 = vpow.pop %v123
  %v125 = vmul.f32 %v68, 1.442695
  %v126 = vpow.pop %v125
  %v127 = vmul.f32 %v69, 1.442695
  %v128 = vpow.pop %v127
  %v129 = vmul.f32 %v70, 1.442695
  %v130 = vpow.pop %v129
  %v131 = vmul.f32 %v71, 1.442695
  %v132 = vpow.pop %v131
  %v133 = vmul.f32 %v72, 1.442695
  %v134 = vpow.pop %v133
  %v135 = vmul.f32 %v73, 1.442695
  %v136 = vpow.pop %v135
  %v137 = vmul.f32 %v74, 1.442695
  %v138 = vpow.pop %v137
  %v139 = vmul.f32 %v75, 1.442695
  %v140 = vpow.pop %v139
  %v141 = vmul.f32 %v76, 1.442695
  %v142 = vpow.pop %v141
  %v143 = vmul.f32 %v77, 1.442695
  %v144 = vpow.pop %v143
  %v145 = vmul.f32 %v78, 1.442695
  %v146 = vpow.pop %v145
  %v147 = vmul.f32 %v79, 1.442695
  %v148 = vpow.pop %v147
  %v149 = vmul.f32 %v80, 1.442695
  %v150 = vpow.pop %v149
  %v151 = vmul.f32 %v81, 1.442695
  %v152 = vpow.pop %v151
  %v153 = vmul.f32 %v82, 1.442695
  %v154 = vpow.pop %v153
  %v155 = vmul.f32 %v83, 1.442695
  %v156 = vpow.pop %v155
  %v157 = vmul.f32 %v84, 1.442695
  %v158 = vpow.pop %v157
  %v159 = vmul.f32 %v85, 1.442695
  %v160 = vpow.pop %v159
  %v161 = vmul.f32 %v86, 1.442695
  %v162 = vpow.pop %v161
  %v163 = vmul.f32 %v87, 1.442695
  %v164 = vpow.pop %v163
  %v165 = vmul.f32 %v88, 1.442695
  %v166 = vpow.pop %v165
  %v167 = vmul.f32 %v89, 1.442695
  %v168 = vpow.pop %v167
  %v169 = vmul.f32 %v90, 1.442695
  %v170 = vpow.pop %v169
  %v171 = vmul.f32 %v91, 1.442695
  %v172 = vpow.pop %v171
  %v173 = vmul.f32 %v92, 1.442695
  %v174 = vpow.pop %v173
  %v175 = vmul.f32 %v93, 1.442695
  %v176 = vpow.pop %v175
  %v177 = vmul.f32 %v94, 1.442695
  %v178 = vpow.pop %v177
  %v179 = vmul.f32 %v95, 1.442695
  %v180 = vpow.pop %v179
  %v181 = vmul.f32 %v96, 1.442695
  %v182 = vpow.pop %v181
  %v183 = vmul.f32 %v97, 1.442695
  %v184 = vpow.pop %v183
  %v185 = vmul.f32 %v98, 1.442695
  %v186 = vpow.pop %v185
  %v187 = vmul.f32 %v99, 1.442695
  %v188 = vpow.pop %v187
  %v189 = vmul.f32 %v100, 1.442695
  %v190 = vpow.pop %v189
  %v191 = vmul.f32 %v101, 1.442695
  %v192 = vpow.pop %v191
  %v193 = vmul.f32 %v102, 1.442695
  %v194 = vpow.pop %v193
  %v195 = vmul.f32 %v103, 1.442695
  %v196 = vpow.pop %v195
  %v197 = vmul.f32 %v104, 1.442695
  %v198 = vpow.pop %v197
  %v199 = vmul.f32 %v105, 1.442695
  %v200 = vpow.pop %v199
  %v201 = vmul.f32 %v106, 1.442695
  %v202 = vpow.pop %v201
  %v203 = vmul.f32 %v107, 1.442695
  %v204 = vpow.pop %v203
  %v205 = vmul.f32 %v108, 1.442695
  %v206 = vpow.pop %v205
  %v207 = vmul.f32 %v109, 1.442695
  %v208 = vpow.pop %v207
  %v209 = vmul.f32 %v110, 1.442695
  %v210 = vpow.pop %v209
  %v211 = vmul.f32 %v111, 1.442695
  %v212 = vpow.pop %v211
  %v213 = vmul.f32 %v112, 1.442695
  %v214 = vpow.pop %v213
  %v215 = vmul.f32 %v113, 1.442695
  %v216 = vpow.pop %v215
  %v217 = vmul.f32 %v114, 1.442695
  %v218 = vpow.pop %v217
  %v219 = vmul.f32 %v115, 1.442695
  %v220 = vpow.pop %v219
  %v221 = vmul.f32 %v116, 1.442695
  %v222 = vpow.pop %v221
  %v223 = vmul.f32 %v117, 1.442695
  %v224 = vpow.pop %v223
  %v225 = vmul.f32 %v118, 1.442695
  %v226 = vpow.pop %v225
  %v227 = vadd.f32 %v120, 1.0
  %v228 = vadd.f32 %v122, 1.0
  %v229 = vadd.f32 %v124, 1.0
  %v230 = vadd.f32 %v126, 1.0
  %v231 = vadd.f32 %v128, 1.0
  %v232 = vadd.f32 %v130, 1.0
  %v233 = vadd.f32 %v132, 1.0
  %v234 = vadd.f32 %v134, 1.0
  %v235 = vadd.f32 %v136, 1.0
  %v236 = vadd.f32 %v138, 1.0
  %v237 = vadd.f32 %v140, 1.0
  %v238 = vadd.f32 %v142, 1.0
  %v239 = vadd.f32 %v144, 1.0
  %v240 = vadd.f32 %v146, 1.0
  %v241 = vadd.f32 %v148, 1.0
  %v242 = vadd.f32 %v150, 1.0
  %v243 = vadd.f32 %v152, 1.0
  %v244 = vadd.f32 %v154, 1.0
  %v245 = vadd.f32 %v156, 1.0
  %v246 = vadd.f32 %v158, 1.0
  %v247 = vadd.f32 %v160, 1.0
  %v248 = vadd.f32 %v162, 1.0
  %v249 = vadd.f32 %v164, 1.0
  %v250 = vadd.f32 %v166, 1.0
  %v251 = vadd.f32 %v168, 1.0
  %v252 = vadd.f32 %v170, 1.0
  %v253 = vadd.f32 %v172, 1.0
  %v254 = vadd.f32 %v174, 1.0
  %v255 = vadd.f32 %v176, 1.0
  %v256 = vadd.f32 %v178, 1.0
  %v257 = vadd.f32 %v180, 1.0
  %v258 = vadd.f32 %v182, 1.0
  %v259 = vadd.f32 %v184, 1.0
  %v260 = vadd.f32 %v186, 1.0
  %v261 = vadd.f32 %v188, 1.0
  %v262 = vadd.f32 %v190, 1.0
  %v263 = vadd.f32 %v192, 1.0
  %v264 = vadd.f32 %v194, 1.0
  %v265 = vadd.f32 %v196, 1.0
  %v266 = vadd.f32 %v198, 1.0
  %v267 = vadd.f32 %v200, 1.0
  %v268 = vadd.f32 %v202, 1.0
  %v269 = vadd.f32 %v204, 1.0
  %v270 = vadd.f32 %v206, 1.0
  %v271 = vadd.f32 %v208, 1.0
  %v272 = vadd.f32 %v210, 1.0
  %v273 = vadd.f32 %v212, 1.0
  %v274 = vadd.f32 %v214, 1.0
  %v275 = vadd.f32 %v216, 1.0
  %v276 = vadd.f32 %v218, 1.0
  %v277 = vadd.f32 %v220, 1.0
  %v278 = vadd.f32 %v222, 1.0
  %v279 = vadd.f32 %v224, 1.0
  %v280 = vadd.f32 %v226, 1.0
  %v281 = vrcp.pop %v227
  %v282 = vmul.f32 1.0, %v281
  %v283 = vrcp.pop %v228
  %v284 = vmul.f32 1.0, %v283
  %v285 = vrcp.pop %v229
  %v286 = vmul.f32 1.0, %v285
  %v287 = vrcp.pop %v230
  %v288 = vmul.f32 1.0, %v287
  %v289 = vrcp.pop %v231
  %v290 = vmul.f32 1.0, %v289
  %v291 = vrcp.pop %v232
  %v292 = vmul.f32 1.0, %v291
  %v293 = vrcp.pop %v233
  %v294 = vmul.f32 1.0, %v293
  %v295 = vrcp.pop %v234
  %v296 = vmul.f32 1.0, %v295
  %v297 = vrcp.pop %v235
  %v298 = vmul.f32 1.0, %v297
  %v299 = vrcp.pop %v236
  %v300 = vmul.f32 1.0, %v299
  %v301 = vrcp.pop %v237
  %v302 = vmul.f32 1.0, %v301
  %v303 = vrcp.pop %v238
  %v304 = vmul.f32 1.0, %v303
  %v305 = vrcp.pop %v239
  %v306 = vmul.f32 1.0, %v305
  %v307 = vrcp.pop %v240
  %v308 = vmul.f32 1.0, %v307
  %v309 = vrcp.pop %v241
  %v310 = vmul.f32 1.0, %v309
  %v311 = vrcp.pop %v242
  %v312 = vmul.f32 1.0, %v311
  %v313 = vrcp.pop %v243
  %v314 = vmul.f32 1.0, %v313
  %v315 = vrcp.pop %v244
  %v316 = vmul.f32 1.0, %v315
  %v317 = vrcp.pop %v245
  %v318 = vmul.f32 1.0, %v317
  %v319 = vrcp.pop %v246
  %v320 = vmul.f32 1.0, %v319
  %v321 = vrcp.pop %v247
  %v322 = vmul.f32 1.0, %v321
  %v323 = vrcp.pop %v248
  %v324 = vmul.f32 1.0, %v323
  %v325 = vrcp.pop %v249
  %v326 = vmul.f32 1.0, %v325
  %v327 = vrcp.pop %v250
  %v328 = vmul.f32 1.0, %v327
  %v329 = vrcp.pop %v251
  %v330 = vmul.f32 1.0, %v329
  %v331 = vrcp.pop %v252
  %v332 = vmul.f32 1.0, %v331
  %v333 = vrcp.pop %v253
  %v334 = vmul.f32 1.0, %v333
  %v335 = vrcp.pop %v254
  %v336 = vmul.f32 1.0, %v335
  %v337 = vrcp.pop %v255
  %v338 = vmul.f32 1.0, %v337
  %v339 = vrcp.pop %v256
  %v340 = vmul.f32 1.0, %v339
  %v341 = vrcp.pop %v257
  %v342 = vmul.f32 1.0, %v341
  %v343 = vrcp.pop %v258
  %v344 = vmul.f32 1.0, %v343
  %v345 = vrcp.pop %v259
  %v346 = vmul.f32 1.0, %v345
  %v347 = vrcp.pop %v260
  %v348 = vmul.f32 1.0, %v347
  %v349 = vrcp.pop %v261
  %v350 = vmul.f32 1.0, %v349
  %v351 = vrcp.pop %v262
  %v352 = vmul.f32 1.0, %v351
  %v353 = vrcp.pop %v263
  %v354 = vmul.f32 1.0, %v353
  %v355 = vrcp.pop %v264
  %v356 = vmul.f32 1.0, %v355
  %v357 = vrcp.pop %v265
  %v358 = vmul.f32 1.0, %v357
  %v359 = vrcp.pop %v266
  %v360 = vmul.f32 1.0, %v359
  %v361 = vrcp.pop %v267
  %v362 = vmul.f32 1.0, %v361
  %v363 = vrcp.pop %v268
  %v364 = vmul.f32 1.0, %v363
  %v365 = vrcp.pop %v269
  %v366 = vmul.f32 1.0, %v365
  %v367 = vrcp.pop %v270
  %v368 = vmul.f32 1.0, %v367
  %v369 = vrcp.pop %v271
  %v370 = vmul.f32 1.0, %v369
  %v371 = vrcp.pop %v272
  %v372 = vmul.f32 1.0, %v371
  %v373 = vrcp.pop %v273
  %v374 = vmul.f32 1.0, %v373
  %v375 = vrcp.pop %v274
  %v376 = vmul.f32 1.0, %v375
  %v377 = vrcp.pop %v275
  %v378 = vmul.f32 1.0, %v377
  %v379 = vrcp.pop %v276
  %v380 = vmul.f32 1.0, %v379
  %v381 = vrcp.pop %v277
  %v382 = vmul.f32 1.0, %v381
  %v383 = vrcp.pop %v278
  %v384 = vmul.f32 1.0, %v383
  %v385 = vrcp.pop %v279
  %v386 = vmul.f32 1.0, %v385
  %v387 = vrcp.pop %v280
  %v388 = vmul.f32 1.0, %v387
  %v389 = vld [vmem:[%s1] sm:$0xff]
  %v390 = vld [vmem:[%s1 + $0x8] sm:$0xff]
  %v391 = vld [vmem:[%s1 + $0x10] sm:$0xff]
  %v392 = vld [vmem:[%s1 + $0x18] sm:$0xff]
  %v393 = vld [vmem:[%s1 + $0x20] sm:$0xff]
  %v394 = vld [vmem:[%s1 + $0x28] sm:$0xff]
  %v395 = vld [vmem:[%s1 + $0x30] sm:$0xff]
  %v396 = vld [vmem:[%s1 + $0x38] sm:$0xff]
  %v397 = vld [vmem:[%s1 + $0x40] sm:$0xff]
  %v398 = vld [vmem:[%s1 + $0x48] sm:$0xff]
  %v399 = vld [vmem:[%s1 + $0x50] sm:$0xff]
  %v400 = vld [vmem:[%s1 + $0x58] sm:$0xff]
  %v401 = vld [vmem:[%s1 + $0x60] sm:$0xff]
  %v402 = vld [vmem:[%s1 + $0x68] sm:$0xff]
  %v403 = vld [vmem:[%s1 + $0x70] sm:$0xff]
  %v404 = vld [vmem:[%s1 + $0x78] sm:$0xff]
  %v405 = vld [vmem:[%s1 + $0x80] sm:$0xff]
  %v406 = vld [vmem:[%s1 + $0x88] sm:$0xff]
  %v407 = vld [vmem:[%s1 + $0x90] sm:$0xff]
  %v408 = vld [vmem:[%s1 + $0x98] sm:$0xff]
  %v409 = vld [vmem:[%s1 + $0xa0] sm:$0xff]
  %v410 = vld [vmem:[%s1 + $0xa8] sm:$0xff]
  %v411 = vld [vmem:[%s1 + $0xb0] sm:$0xff]
  %v412 = vld [vmem:[%s1 + $0xb8] sm:$0xff]
  %v413 = vld [vmem:[%s1 + $0xc0] sm:$0xff]
  %v414 = vld [vmem:[%s1 + $0xc8] sm:$0xff]
  %v415 = vld [vmem:[%s1 + $0xd0] sm:$0xff]
  %v416 = vld [vmem:[%s1 + $0xd8] sm:$0xff]
  %v417 = vld [vmem:[%s1 + $0xe0] sm:$0xff]
  %v418 = vld [vmem:[%s1 + $0xe8] sm:$0xff]
  %v419 = vld [vmem:[%s1 + $0xf0] sm:$0xff]
  %v420 = vld [vmem:[%s1 + $0xf8] sm:$0xff]
  %v421 = vld [vmem:[%s1 + $0x100] sm:$0xff]
  %v422 = vld [vmem:[%s1 + $0x108] sm:$0xff]
  %v423 = vld [vmem:[%s1 + $0x110] sm:$0xff]
  %v424 = vld [vmem:[%s1 + $0x118] sm:$0xff]
  %v425 = vld [vmem:[%s1 + $0x120] sm:$0xff]
  %v426 = vld [vmem:[%s1 + $0x128] sm:$0xff]
  %v427 = vld [vmem:[%s1 + $0x130] sm:$0xff]
  %v428 = vld [vmem:[%s1 + $0x138] sm:$0xff]
  %v429 = vld [vmem:[%s1 + $0x140] sm:$0xff]
  %v430 = vld [vmem:[%s1 + $0x148] sm:$0xff]
  %v431 = vld [vmem:[%s1 + $0x150] sm:$0xff]
  %v432 = vld [vmem:[%s1 + $0x158] sm:$0xff]
  %v433 = vld [vmem:[%s1 + $0x160] sm:$0xff]
  %v434 = vld [vmem:[%s1 + $0x168] sm:$0xff]
  %v435 = vld [vmem:[%s1 + $0x170] sm:$0xff]
  %v436 = vld [vmem:[%s1 + $0x178] sm:$0xff]
  %v437 = vld [vmem:[%s1 + $0x180] sm:$0xff]
  %v438 = vld [vmem:[%s1 + $0x188] sm:$0xff]
  %v439 = vld [vmem:[%s1 + $0x190] sm:$0xff]
  %v440 = vld [vmem:[%s1 + $0x198] sm:$0xff]
  %v441 = vld [vmem:[%s1 + $0x1a0] sm:$0xff]
  %v442 = vld [vmem:[%s1 + $0x1a8] sm:$0xff]
  %v443 = vld [vmem:[%s1 + $0x1b0] sm:$0xff]
  %v444 = vld [vmem:[%s1 + $0x1b8] sm:$0xff]
  %v445 = vld [vmem:[%s1 + $0x1c0] sm:$0xff]
  %v446 = vld [vmem:[%s1 + $0x1c8] sm:$0xff]
  %v447 = vld [vmem:[%s1 + $0x1d0] sm:$0xff]
  %v448 = vld [vmem:[%s1 + $0x1d8] sm:$0xff]
  %v449 = vld [vmem:[%s1 + $0x1e0] sm:$0xff]
  %v450 = vld [vmem:[%s1 + $0x1e8] sm:$0xff]
  %v451 = vld [vmem:[%s1 + $0x1f0] sm:$0xff]
  %v452 = vld [vmem:[%s1 + $0x1f8] sm:$0xff]
  %v453 = vld [vmem:[%s1 + $0x200] sm:$0xff]
  %v454 = vld [vmem:[%s1 + $0x208] sm:$0xff]
  %v455 = vld [vmem:[%s1 + $0x210] sm:$0xff]
  %v456 = vld [vmem:[%s1 + $0x218] sm:$0xff]
  %v457 = vld [vmem:[%s1 + $0x220] sm:$0xff]
  %v458 = vld [vmem:[%s1 + $0x228] sm:$0xff]
  %v459 = vld [vmem:[%s1 + $0x230] sm:$0xff]
  %v460 = vld [vmem:[%s1 + $0x238] sm:$0xff]
  %v461 = vld [vmem:[%s1 + $0x240] sm:$0xff]
  %v462 = vld [vmem:[%s1 + $0x248] sm:$0xff]
  %v463 = vld [vmem:[%s1 + $0x250] sm:$0xff]
  %v464 = vld [vmem:[%s1 + $0x258] sm:$0xff]
  %v465 = vld [vmem:[%s1 + $0x260] sm:$0xff]
  %v466 = vld [vmem:[%s1 + $0x268] sm:$0xff]
  %v467 = vld [vmem:[%s1 + $0x270] sm:$0xff]
  %v468 = vld [vmem:[%s1 + $0x278] sm:$0xff]
  %v469 = vld [vmem:[%s1 + $0x280] sm:$0xff]
  %v470 = vld [vmem:[%s1 + $0x288] sm:$0xff]
  %v471 = vld [vmem:[%s1 + $0x290] sm:$0xff]
  %v472 = vld [vmem:[%s1 + $0x298] sm:$0xff]
  %v473 = vld [vmem:[%s1 + $0x2a0] sm:$0xff]
  %v474 = vld [vmem:[%s1 + $0x2a8] sm:$0xff]
  %v475 = vld [vmem:[%s1 + $0x2b0] sm:$0xff]
  %v476 = vld [vmem:[%s1 + $0x2b8] sm:$0xff]
  %v477 = vld [vmem:[%s1 + $0x2c0] sm:$0xff]
  %v478 = vld [vmem:[%s1 + $0x2c8] sm:$0xff]
  %v479 = vld [vmem:[%s1 + $0x2d0] sm:$0xff]
  %v480 = vld [vmem:[%s1 + $0x2d8] sm:$0xff]
  %v481 = vld [vmem:[%s1 + $0x2e0] sm:$0xff]
  %v482 = vld [vmem:[%s1 + $0x2e8] sm:$0xff]
  %v483 = vld [vmem:[%s1 + $0x2f0] sm:$0xff]
  %v484 = vld [vmem:[%s1 + $0x2f8] sm:$0xff]
  %v485 = vld [vmem:[%s1 + $0x300] sm:$0xff]
  %v486 = vld [vmem:[%s1 + $0x308] sm:$0xff]
  %v487 = vld [vmem:[%s1 + $0x310] sm:$0xff]
  %v488 = vld [vmem:[%s1 + $0x318] sm:$0xff]
  %v489 = vld [vmem:[%s1 + $0x320] sm:$0xff]
  %v490 = vld [vmem:[%s1 + $0x328] sm:$0xff]
  %v491 = vld [vmem:[%s1 + $0x330] sm:$0xff]
  %v492 = vld [vmem:[%s1 + $0x338] sm:$0xff]
  %v493 = vld [vmem:[%s1 + $0x340] sm:$0xff]
  %v494 = vld [vmem:[%s1 + $0x348] sm:$0xff]
  %v495 = vld [vmem:[%s1 + $0x350] sm:$0xff]
  %v496 = vld [vmem:[%s1 + $0x358] sm:$0xff]
  %498 = vset.pattern.permute.xlu0 0
  %499 = vperm.xlu0 %498, %v282
  %v500 = vpop.permute.xlu0 %499
  %503 = vset.pattern.permute.xlu0 0
  %504 = vperm.xlu0 %503, %v284
  %v505 = vpop.permute.xlu0 %504
  %508 = vset.pattern.permute.xlu0 0
  %509 = vperm.xlu0 %508, %v286
  %v510 = vpop.permute.xlu0 %509
  %513 = vset.pattern.permute.xlu0 0
  %514 = vperm.xlu0 %513, %v288
  %v515 = vpop.permute.xlu0 %514
  %518 = vset.pattern.permute.xlu0 0
  %519 = vperm.xlu0 %518, %v290
  %v520 = vpop.permute.xlu0 %519
  %523 = vset.pattern.permute.xlu0 0
  %524 = vperm.xlu0 %523, %v292
  %v525 = vpop.permute.xlu0 %524
  %528 = vset.pattern.permute.xlu0 0
  %529 = vperm.xlu0 %528, %v294
  %v530 = vpop.permute.xlu0 %529
  %533 = vset.pattern.permute.xlu0 0
  %534 = vperm.xlu0 %533, %v296
  %v535 = vpop.permute.xlu0 %534
  %538 = vset.pattern.permute.xlu0 0
  %539 = vperm.xlu0 %538, %v298
  %v540 = vpop.permute.xlu0 %539
  %543 = vset.pattern.permute.xlu0 0
  %544 = vperm.xlu0 %543, %v300
  %v545 = vpop.permute.xlu0 %544
  %548 = vset.pattern.permute.xlu0 0
  %549 = vperm.xlu0 %548, %v302
  %v550 = vpop.permute.xlu0 %549
  %553 = vset.pattern.permute.xlu0 0
  %554 = vperm.xlu0 %553, %v304
  %v555 = vpop.permute.xlu0 %554
  %558 = vset.pattern.permute.xlu0 0
  %559 = vperm.xlu0 %558, %v306
  %v560 = vpop.permute.xlu0 %559
  %563 = vset.pattern.permute.xlu0 0
  %564 = vperm.xlu0 %563, %v308
  %v565 = vpop.permute.xlu0 %564
  %568 = vset.pattern.permute.xlu0 0
  %569 = vperm.xlu0 %568, %v310
  %v570 = vpop.permute.xlu0 %569
  %573 = vset.pattern.permute.xlu0 0
  %574 = vperm.xlu0 %573, %v312
  %v575 = vpop.permute.xlu0 %574
  %578 = vset.pattern.permute.xlu0 0
  %579 = vperm.xlu0 %578, %v314
  %v580 = vpop.permute.xlu0 %579
  %583 = vset.pattern.permute.xlu0 0
  %584 = vperm.xlu0 %583, %v316
  %v585 = vpop.permute.xlu0 %584
  %588 = vset.pattern.permute.xlu0 0
  %589 = vperm.xlu0 %588, %v318
  %v590 = vpop.permute.xlu0 %589
  %593 = vset.pattern.permute.xlu0 0
  %594 = vperm.xlu0 %593, %v320
  %v595 = vpop.permute.xlu0 %594
  %598 = vset.pattern.permute.xlu0 0
  %599 = vperm.xlu0 %598, %v322
  %v600 = vpop.permute.xlu0 %599
  %603 = vset.pattern.permute.xlu0 0
  %604 = vperm.xlu0 %603, %v324
  %v605 = vpop.permute.xlu0 %604
  %608 = vset.pattern.permute.xlu0 0
  %609 = vperm.xlu0 %608, %v326
  %v610 = vpop.permute.xlu0 %609
  %613 = vset.pattern.permute.xlu0 0
  %614 = vperm.xlu0 %613, %v328
  %v615 = vpop.permute.xlu0 %614
  %618 = vset.pattern.permute.xlu0 0
  %619 = vperm.xlu0 %618, %v330
  %v620 = vpop.permute.xlu0 %619
  %623 = vset.pattern.permute.xlu0 0
  %624 = vperm.xlu0 %623, %v332
  %v625 = vpop.permute.xlu0 %624
  %628 = vset.pattern.permute.xlu0 0
  %629 = vperm.xlu0 %628, %v334
  %v630 = vpop.permute.xlu0 %629
  %633 = vset.pattern.permute.xlu0 0
  %634 = vperm.xlu0 %633, %v336
  %v635 = vpop.permute.xlu0 %634
  %638 = vset.pattern.permute.xlu0 0
  %639 = vperm.xlu0 %638, %v338
  %v640 = vpop.permute.xlu0 %639
  %643 = vset.pattern.permute.xlu0 0
  %644 = vperm.xlu0 %643, %v340
  %v645 = vpop.permute.xlu0 %644
  %648 = vset.pattern.permute.xlu0 0
  %649 = vperm.xlu0 %648, %v342
  %v650 = vpop.permute.xlu0 %649
  %653 = vset.pattern.permute.xlu0 0
  %654 = vperm.xlu0 %653, %v344
  %v655 = vpop.permute.xlu0 %654
  %658 = vset.pattern.permute.xlu0 0
  %659 = vperm.xlu0 %658, %v346
  %v660 = vpop.permute.xlu0 %659
  %663 = vset.pattern.permute.xlu0 0
  %664 = vperm.xlu0 %663, %v348
  %v665 = vpop.permute.xlu0 %664
  %668 = vset.pattern.permute.xlu0 0
  %669 = vperm.xlu0 %668, %v350
  %v670 = vpop.permute.xlu0 %669
  %673 = vset.pattern.permute.xlu0 0
  %674 = vperm.xlu0 %673, %v352
  %v675 = vpop.permute.xlu0 %674
  %678 = vset.pattern.permute.xlu0 0
  %679 = vperm.xlu0 %678, %v354
  %v680 = vpop.permute.xlu0 %679
  %683 = vset.pattern.permute.xlu0 0
  %684 = vperm.xlu0 %683, %v356
  %v685 = vpop.permute.xlu0 %684
  %688 = vset.pattern.permute.xlu0 0
  %689 = vperm.xlu0 %688, %v358
  %v690 = vpop.permute.xlu0 %689
  %693 = vset.pattern.permute.xlu0 0
  %694 = vperm.xlu0 %693, %v360
  %v695 = vpop.permute.xlu0 %694
  %698 = vset.pattern.permute.xlu0 0
  %699 = vperm.xlu0 %698, %v362
  %v700 = vpop.permute.xlu0 %699
  %703 = vset.pattern.permute.xlu0 0
  %704 = vperm.xlu0 %703, %v364
  %v705 = vpop.permute.xlu0 %704
  %708 = vset.pattern.permute.xlu0 0
  %709 = vperm.xlu0 %708, %v366
  %v710 = vpop.permute.xlu0 %709
  %713 = vset.pattern.permute.xlu0 0
  %714 = vperm.xlu0 %713, %v368
  %v715 = vpop.permute.xlu0 %714
  %718 = vset.pattern.permute.xlu0 0
  %719 = vperm.xlu0 %718, %v370
  %v720 = vpop.permute.xlu0 %719
  %723 = vset.pattern.permute.xlu0 0
  %724 = vperm.xlu0 %723, %v372
  %v725 = vpop.permute.xlu0 %724
  %728 = vset.pattern.permute.xlu0 0
  %729 = vperm.xlu0 %728, %v374
  %v730 = vpop.permute.xlu0 %729
  %733 = vset.pattern.permute.xlu0 0
  %734 = vperm.xlu0 %733, %v376
  %v735 = vpop.permute.xlu0 %734
  %738 = vset.pattern.permute.xlu0 0
  %739 = vperm.xlu0 %738, %v378
  %v740 = vpop.permute.xlu0 %739
  %743 = vset.pattern.permute.xlu0 0
  %744 = vperm.xlu0 %743, %v380
  %v745 = vpop.permute.xlu0 %744
  %748 = vset.pattern.permute.xlu0 0
  %749 = vperm.xlu0 %748, %v382
  %v750 = vpop.permute.xlu0 %749
  %753 = vset.pattern.permute.xlu0 0
  %754 = vperm.xlu0 %753, %v384
  %v755 = vpop.permute.xlu0 %754
  %758 = vset.pattern.permute.xlu0 0
  %759 = vperm.xlu0 %758, %v386
  %v760 = vpop.permute.xlu0 %759
  %763 = vset.pattern.permute.xlu0 0
  %764 = vperm.xlu0 %763, %v388
  %v765 = vpop.permute.xlu0 %764
  %v767 = vmul.f32 %v389, %v500
  %v768 = vmul.f32 %v390, %v500
  %v769 = vmul.f32 %v391, %v505
  %v770 = vmul.f32 %v392, %v505
  %v771 = vmul.f32 %v393, %v510
  %v772 = vmul.f32 %v394, %v510
  %v773 = vmul.f32 %v395, %v515
  %v774 = vmul.f32 %v396, %v515
  %v775 = vmul.f32 %v397, %v520
  %v776 = vmul.f32 %v398, %v520
  %v777 = vmul.f32 %v399, %v525
  %v778 = vmul.f32 %v400, %v525
  %v779 = vmul.f32 %v401, %v530
  %v780 = vmul.f32 %v402, %v530
  %v781 = vmul.f32 %v403, %v535
  %v782 = vmul.f32 %v404, %v535
  %v783 = vmul.f32 %v405, %v540
  %v784 = vmul.f32 %v406, %v540
  %v785 = vmul.f32 %v407, %v545
  %v786 = vmul.f32 %v408, %v545
  %v787 = vmul.f32 %v409, %v550
  %v788 = vmul.f32 %v410, %v550
  %v789 = vmul.f32 %v411, %v555
  %v790 = vmul.f32 %v412, %v555
  %v791 = vmul.f32 %v413, %v560
  %v792 = vmul.f32 %v414, %v560
  %v793 = vmul.f32 %v415, %v565
  %v794 = vmul.f32 %v416, %v565
  %v795 = vmul.f32 %v417, %v570
  %v796 = vmul.f32 %v418, %v570
  %v797 = vmul.f32 %v419, %v575
  %v798 = vmul.f32 %v420, %v575
  %v799 = vmul.f32 %v421, %v580
  %v800 = vmul.f32 %v422, %v580
  %v801 = vmul.f32 %v423, %v585
  %v802 = vmul.f32 %v424, %v585
  %v803 = vmul.f32 %v425, %v590
  %v804 = vmul.f32 %v426, %v590
  %v805 = vmul.f32 %v427, %v595
  %v806 = vmul.f32 %v428, %v595
  %v807 = vmul.f32 %v429, %v600
  %v808 = vmul.f32 %v430, %v600
  %v809 = vmul.f32 %v431, %v605
  %v810 = vmul.f32 %v432, %v605
  %v811 = vmul.f32 %v433, %v610
  %v812 = vmul.f32 %v434, %v610
  %v813 = vmul.f32 %v435, %v615
  %v814 = vmul.f32 %v436, %v615
  %v815 = vmul.f32 %v437, %v620
  %v816 = vmul.f32 %v438, %v620
  %v817 = vmul.f32 %v439, %v625
  %v818 = vmul.f32 %v440, %v625
  %v819 = vmul.f32 %v441, %v630
  %v820 = vmul.f32 %v442, %v630
  %v821 = vmul.f32 %v443, %v635
  %v822 = vmul.f32 %v444, %v635
  %v823 = vmul.f32 %v445, %v640
  %v824 = vmul.f32 %v446, %v640
  %v825 = vmul.f32 %v447, %v645
  %v826 = vmul.f32 %v448, %v645
  %v827 = vmul.f32 %v449, %v650
  %v828 = vmul.f32 %v450, %v650
  %v829 = vmul.f32 %v451, %v655
  %v830 = vmul.f32 %v452, %v655
  %v831 = vmul.f32 %v453, %v660
  %v832 = vmul.f32 %v454, %v660
  %v833 = vmul.f32 %v455, %v665
  %v834 = vmul.f32 %v456, %v665
  %v835 = vmul.f32 %v457, %v670
  %v836 = vmul.f32 %v458, %v670
  %v837 = vmul.f32 %v459, %v675
  %v838 = vmul.f32 %v460, %v675
  %v839 = vmul.f32 %v461, %v680
  %v840 = vmul.f32 %v462, %v680
  %v841 = vmul.f32 %v463, %v685
  %v842 = vmul.f32 %v464, %v685
  %v843 = vmul.f32 %v465, %v690
  %v844 = vmul.f32 %v466, %v690
  %v845 = vmul.f32 %v467, %v695
  %v846 = vmul.f32 %v468, %v695
  %v847 = vmul.f32 %v469, %v700
  %v848 = vmul.f32 %v470, %v700
  %v849 = vmul.f32 %v471, %v705
  %v850 = vmul.f32 %v472, %v705
  %v851 = vmul.f32 %v473, %v710
  %v852 = vmul.f32 %v474, %v710
  %v853 = vmul.f32 %v475, %v715
  %v854 = vmul.f32 %v476, %v715
  %v855 = vmul.f32 %v477, %v720
  %v856 = vmul.f32 %v478, %v720
  %v857 = vmul.f32 %v479, %v725
  %v858 = vmul.f32 %v480, %v725
  %v859 = vmul.f32 %v481, %v730
  %v860 = vmul.f32 %v482, %v730
  %v861 = vmul.f32 %v483, %v735
  %v862 = vmul.f32 %v484, %v735
  %v863 = vmul.f32 %v485, %v740
  %v864 = vmul.f32 %v486, %v740
  %v865 = vmul.f32 %v487, %v745
  %v866 = vmul.f32 %v488, %v745
  %v867 = vmul.f32 %v489, %v750
  %v868 = vmul.f32 %v490, %v750
  %v869 = vmul.f32 %v491, %v755
  %v870 = vmul.f32 %v492, %v755
  %v871 = vmul.f32 %v493, %v760
  %v872 = vmul.f32 %v494, %v760
  %v873 = vmul.f32 %v495, %v765
  %v874 = vmul.f32 %v496, %v765
  %875 = vst [vmem:[%s2] sm:$0xff] %v767
  %vm876 = vcmask 556032
  %877 = vst.msk [vmem:[%s2 + $0x8] sm:$0xff] %vm876, %v768
  %878 = vst [vmem:[%s2 + $0x10] sm:$0xff] %v769
  %879 = vst.msk [vmem:[%s2 + $0x18] sm:$0xff] %vm876, %v770
  %880 = vst [vmem:[%s2 + $0x20] sm:$0xff] %v771
  %881 = vst.msk [vmem:[%s2 + $0x28] sm:$0xff] %vm876, %v772
  %882 = vst [vmem:[%s2 + $0x30] sm:$0xff] %v773
  %883 = vst.msk [vmem:[%s2 + $0x38] sm:$0xff] %vm876, %v774
  %884 = vst [vmem:[%s2 + $0x40] sm:$0xff] %v775
  %885 = vst.msk [vmem:[%s2 + $0x48] sm:$0xff] %vm876, %v776
  %886 = vst [vmem:[%s2 + $0x50] sm:$0xff] %v777
  %887 = vst.msk [vmem:[%s2 + $0x58] sm:$0xff] %vm876, %v778
  %888 = vst [vmem:[%s2 + $0x60] sm:$0xff] %v779
  %889 = vst.msk [vmem:[%s2 + $0x68] sm:$0xff] %vm876, %v780
  %890 = vst [vmem:[%s2 + $0x70] sm:$0xff] %v781
  %891 = vst.msk [vmem:[%s2 + $0x78] sm:$0xff] %vm876, %v782
  %892 = vst [vmem:[%s2 + $0x80] sm:$0xff] %v783
  %893 = vst.msk [vmem:[%s2 + $0x88] sm:$0xff] %vm876, %v784
  %894 = vst [vmem:[%s2 + $0x90] sm:$0xff] %v785
  %895 = vst.msk [vmem:[%s2 + $0x98] sm:$0xff] %vm876, %v786
  %896 = vst [vmem:[%s2 + $0xa0] sm:$0xff] %v787
  %897 = vst.msk [vmem:[%s2 + $0xa8] sm:$0xff] %vm876, %v788
  %898 = vst [vmem:[%s2 + $0xb0] sm:$0xff] %v789
  %899 = vst.msk [vmem:[%s2 + $0xb8] sm:$0xff] %vm876, %v790
  %900 = vst [vmem:[%s2 + $0xc0] sm:$0xff] %v791
  %901 = vst.msk [vmem:[%s2 + $0xc8] sm:$0xff] %vm876, %v792
  %902 = vst [vmem:[%s2 + $0xd0] sm:$0xff] %v793
  %903 = vst.msk [vmem:[%s2 + $0xd8] sm:$0xff] %vm876, %v794
  %904 = vst [vmem:[%s2 + $0xe0] sm:$0xff] %v795
  %905 = vst.msk [vmem:[%s2 + $0xe8] sm:$0xff] %vm876, %v796
  %906 = vst [vmem:[%s2 + $0xf0] sm:$0xff] %v797
  %907 = vst.msk [vmem:[%s2 + $0xf8] sm:$0xff] %vm876, %v798
  %908 = vst [vmem:[%s2 + $0x100] sm:$0xff] %v799
  %909 = vst.msk [vmem:[%s2 + $0x108] sm:$0xff] %vm876, %v800
  %910 = vst [vmem:[%s2 + $0x110] sm:$0xff] %v801
  %911 = vst.msk [vmem:[%s2 + $0x118] sm:$0xff] %vm876, %v802
  %912 = vst [vmem:[%s2 + $0x120] sm:$0xff] %v803
  %913 = vst.msk [vmem:[%s2 + $0x128] sm:$0xff] %vm876, %v804
  %914 = vst [vmem:[%s2 + $0x130] sm:$0xff] %v805
  %915 = vst.msk [vmem:[%s2 + $0x138] sm:$0xff] %vm876, %v806
  %916 = vst [vmem:[%s2 + $0x140] sm:$0xff] %v807
  %917 = vst.msk [vmem:[%s2 + $0x148] sm:$0xff] %vm876, %v808
  %918 = vst [vmem:[%s2 + $0x150] sm:$0xff] %v809
  %919 = vst.msk [vmem:[%s2 + $0x158] sm:$0xff] %vm876, %v810
  %920 = vst [vmem:[%s2 + $0x160] sm:$0xff] %v811
  %921 = vst.msk [vmem:[%s2 + $0x168] sm:$0xff] %vm876, %v812
  %922 = vst [vmem:[%s2 + $0x170] sm:$0xff] %v813
  %923 = vst.msk [vmem:[%s2 + $0x178] sm:$0xff] %vm876, %v814
  %924 = vst [vmem:[%s2 + $0x180] sm:$0xff] %v815
  %925 = vst.msk [vmem:[%s2 + $0x188] sm:$0xff] %vm876, %v816
  %926 = vst [vmem:[%s2 + $0x190] sm:$0xff] %v817
  %927 = vst.msk [vmem:[%s2 + $0x198] sm:$0xff] %vm876, %v818
  %928 = vst [vmem:[%s2 + $0x1a0] sm:$0xff] %v819
  %929 = vst.msk [vmem:[%s2 + $0x1a8] sm:$0xff] %vm876, %v820
  %930 = vst [vmem:[%s2 + $0x1b0] sm:$0xff] %v821
  %931 = vst.msk [vmem:[%s2 + $0x1b8] sm:$0xff] %vm876, %v822
  %932 = vst [vmem:[%s2 + $0x1c0] sm:$0xff] %v823
  %933 = vst.msk [vmem:[%s2 + $0x1c8] sm:$0xff] %vm876, %v824
  %934 = vst [vmem:[%s2 + $0x1d0] sm:$0xff] %v825
  %935 = vst.msk [vmem:[%s2 + $0x1d8] sm:$0xff] %vm876, %v826
  %936 = vst [vmem:[%s2 + $0x1e0] sm:$0xff] %v827
  %937 = vst.msk [vmem:[%s2 + $0x1e8] sm:$0xff] %vm876, %v828
  %938 = vst [vmem:[%s2 + $0x1f0] sm:$0xff] %v829
  %939 = vst.msk [vmem:[%s2 + $0x1f8] sm:$0xff] %vm876, %v830
  %940 = vst [vmem:[%s2 + $0x200] sm:$0xff] %v831
  %941 = vst.msk [vmem:[%s2 + $0x208] sm:$0xff] %vm876, %v832
  %942 = vst [vmem:[%s2 + $0x210] sm:$0xff] %v833
  %943 = vst.msk [vmem:[%s2 + $0x218] sm:$0xff] %vm876, %v834
  %944 = vst [vmem:[%s2 + $0x220] sm:$0xff] %v835
  %945 = vst.msk [vmem:[%s2 + $0x228] sm:$0xff] %vm876, %v836
  %946 = vst [vmem:[%s2 + $0x230] sm:$0xff] %v837
  %947 = vst.msk [vmem:[%s2 + $0x238] sm:$0xff] %vm876, %v838
  %948 = vst [vmem:[%s2 + $0x240] sm:$0xff] %v839
  %949 = vst.msk [vmem:[%s2 + $0x248] sm:$0xff] %vm876, %v840
  %950 = vst [vmem:[%s2 + $0x250] sm:$0xff] %v841
  %951 = vst.msk [vmem:[%s2 + $0x258] sm:$0xff] %vm876, %v842
  %952 = vst [vmem:[%s2 + $0x260] sm:$0xff] %v843
  %953 = vst.msk [vmem:[%s2 + $0x268] sm:$0xff] %vm876, %v844
  %954 = vst [vmem:[%s2 + $0x270] sm:$0xff] %v845
  %955 = vst.msk [vmem:[%s2 + $0x278] sm:$0xff] %vm876, %v846
  %956 = vst [vmem:[%s2 + $0x280] sm:$0xff] %v847
  %957 = vst.msk [vmem:[%s2 + $0x288] sm:$0xff] %vm876, %v848
  %958 = vst [vmem:[%s2 + $0x290] sm:$0xff] %v849
  %959 = vst.msk [vmem:[%s2 + $0x298] sm:$0xff] %vm876, %v850
  %960 = vst [vmem:[%s2 + $0x2a0] sm:$0xff] %v851
  %961 = vst.msk [vmem:[%s2 + $0x2a8] sm:$0xff] %vm876, %v852
  %962 = vst [vmem:[%s2 + $0x2b0] sm:$0xff] %v853
  %963 = vst.msk [vmem:[%s2 + $0x2b8] sm:$0xff] %vm876, %v854
  %964 = vst [vmem:[%s2 + $0x2c0] sm:$0xff] %v855
  %965 = vst.msk [vmem:[%s2 + $0x2c8] sm:$0xff] %vm876, %v856
  %966 = vst [vmem:[%s2 + $0x2d0] sm:$0xff] %v857
  %967 = vst.msk [vmem:[%s2 + $0x2d8] sm:$0xff] %vm876, %v858
  %968 = vst [vmem:[%s2 + $0x2e0] sm:$0xff] %v859
  %969 = vst.msk [vmem:[%s2 + $0x2e8] sm:$0xff] %vm876, %v860
  %970 = vst [vmem:[%s2 + $0x2f0] sm:$0xff] %v861
  %971 = vst.msk [vmem:[%s2 + $0x2f8] sm:$0xff] %vm876, %v862
  %972 = vst [vmem:[%s2 + $0x300] sm:$0xff] %v863
  %973 = vst.msk [vmem:[%s2 + $0x308] sm:$0xff] %vm876, %v864
  %974 = vst [vmem:[%s2 + $0x310] sm:$0xff] %v865
  %975 = vst.msk [vmem:[%s2 + $0x318] sm:$0xff] %vm876, %v866
  %976 = vst [vmem:[%s2 + $0x320] sm:$0xff] %v867
  %977 = vst.msk [vmem:[%s2 + $0x328] sm:$0xff] %vm876, %v868
  %978 = vst [vmem:[%s2 + $0x330] sm:$0xff] %v869
  %979 = vst.msk [vmem:[%s2 + $0x338] sm:$0xff] %vm876, %v870
  %980 = vst [vmem:[%s2 + $0x340] sm:$0xff] %v871
  %981 = vst.msk [vmem:[%s2 + $0x348] sm:$0xff] %vm876, %v872
  %982 = vst [vmem:[%s2 + $0x350] sm:$0xff] %v873
  %983 = vst.msk [vmem:[%s2 + $0x358] sm:$0xff] %vm876, %v874
  // Predicated region
  $region10: #{tpu_custom_call.1} parent=0 // pred_check
    _
  $region11: #{tpu_custom_call.1} parent=0 // pred_check_branch
    %985 = sbr.rel (0) target = $region13
  $region12: #{tpu_custom_call.1} parent=0 // pred_region
    _
  $region13: #{tpu_custom_call.1} parent=0 // pred_fallthru
    _
  // Predicated region
  $region14: #{tpu_custom_call.1} parent=0 // pred_check
    _
  $region15: #{tpu_custom_call.1} parent=0 // pred_check_branch
    %987 = sbr.rel (0) target = $region17
  $region16: #{tpu_custom_call.1} parent=0 // pred_region
    _
  $region17: #{tpu_custom_call.1} parent=0 // pred_fallthru
    _

</llo_original>
